<compile_context>
chip_gen: v7x
topology: tpu7x:2x2x1
jax: 0.10.0
libtpu: 0.0.40
codegen_flags: <defaults>
</compile_context>

<pallas_src>
import functools

import jax
import jax.numpy as jnp
from jax import lax
from jax.experimental import pallas as pl
from jax.experimental.pallas import tpu as pltpu


def _round_up(x, m):
    return ((x + m - 1) // m) * m


def _pick_tile(n, requested):
    """Largest multiple of 256 that divides n (n is a multiple of 256) and <= requested."""
    requested = max(256, int(requested))
    best = 256
    t = 256
    lim = min(requested, n)
    while t <= lim:
        if n % t == 0:
            best = t
        t += 256
    return best


def _vmem_capacity_bytes():
    """Physical VMEM of the local TPU generation (64 MiB v7x, 128 MiB v5e/v6e)."""
    try:
        info = pltpu.get_tpu_info()
        cap = getattr(info, "vmem_capacity_bytes", None)
        if cap:
            return int(cap)
    except Exception:
        pass
    return 64 << 20  # conservative (v7x) fallback


# ------------------------------------------------------------------ kernel 1
def _xw_kernel(x_ref, w_ref, xw_ref):
    # X tile (t1, F_in_pad) @ W.T (F_in_pad, F_out_pad): f32 MXU accumulate,
    # stored as a lane-dense bf16 panel.
    xw_ref[...] = jnp.dot(
        x_ref[...], w_ref[...], preferred_element_type=jnp.float32
    ).astype(xw_ref.dtype)


# ------------------------------------------------------------------ kernel 2
def _gcn_agg_kernel(adj_ref, xw_ref, b_ref, o_ref, deg_ref, *,
                    tk, n_valid, mask_cols, xw_resident):
    k = pl.program_id(1)

    @pl.when(k == 0)
    def _init():
        o_ref[...] = jnp.zeros_like(o_ref)
        deg_ref[...] = jnp.zeros_like(deg_ref)

    # adjacency tile streamed as int8, upcast on the VPU right before the MXU
    a = adj_ref[...].astype(jnp.bfloat16)                       # (tm, tk)
    if mask_cols:
        # ragged source edge: zero columns past the real node count
        src = k * tk + lax.broadcasted_iota(jnp.int32, a.shape, 1)
        a = jnp.where(src < n_valid, a, 0)

    if xw_resident:
        # full XW panel resident in VMEM; slice this step's (tk, F_out) strip
        start = pl.multiple_of(k * tk, tk)
        xw = xw_ref[pl.ds(start, tk), :]
    else:
        xw = xw_ref[...]

    # aggregation on the MXU, accumulating directly into the f32 output block
    o_ref[...] += jnp.dot(a, xw, preferred_element_type=jnp.float32)
    # fused in-degree: row-sum of this adjacency tile (XLU, widened on the fly)
    deg_ref[...] += jnp.sum(a, axis=1, keepdims=True, dtype=jnp.float32)

    @pl.when(k == pl.num_programs(1) - 1)
    def _epilogue():
        inv_deg = pl.reciprocal(jnp.maximum(deg_ref[...], 1.0), approx=True)
        o_ref[...] = jnp.maximum(o_ref[...] * inv_deg + b_ref[...], 0.0)


# ------------------------------------------------------------------ wrapper
@functools.partial(jax.jit, static_argnames=("tm", "tk"))
def gcn_layer(adj, x, weight, bias, *, tm=1024, tk=2048):
    """GCN layer forward.

    adj:    (N, N), adj[dst, src] = 1 if edge src->dst. Pass it as int8 (0/1)
            to avoid any wrapper-side O(N^2) cast.
    x:      (N, F_in) node features.
    weight: (F_out, F_in), bias: (F_out,)  -- nn.Linear parameters.
    returns (N, F_out) = relu(((A @ X) / max(in_deg, 1)) @ W.T + b)
    """
    N, f_in = x.shape
    f_out = weight.shape[0]
    f_in_p = _round_up(f_in, 128)
    f_out_p = _round_up(f_out, 128)

    # generation-aware VMEM budget (~51 MiB on v7x, ~102 MiB on v5e/v6e)
    vmem_budget = int(_vmem_capacity_bytes() * 0.8)

    # ---- adjacency: int8 stream, no O(N^2) pad for large graphs ----
    if adj.dtype != jnp.int8:
        adj = adj.astype(jnp.int8)          # 0/1 exact; pass int8 to skip this
    n_pad = _round_up(max(N, 256), 256)
    if N < 256:
        # tiny graph: a <=256x256 int8 pad is negligible, avoids sub-tile blocks
        adj_s = jnp.zeros((n_pad, n_pad), jnp.int8).at[:N, :N].set(adj)
        adj_padded = True
    else:
        adj_s = adj                          # streamed ragged; masked in-kernel
        adj_padded = False
    mask_cols = (not adj_padded) and (N != n_pad)

    # ---- cheap O(N*F) padding of features / params to lane-dense panels ----
    x_p = jnp.zeros((n_pad, f_in_p), jnp.float32).at[:N, :f_in].set(
        x.astype(jnp.float32))
    w_t_p = jnp.zeros((f_in_p, f_out_p), jnp.float32).at[:f_in, :f_out].set(
        weight.T.astype(jnp.float32))
    b_p = jnp.zeros((1, f_out_p), jnp.float32).at[0, :f_out].set(
        bias.astype(jnp.float32))

    # ---- kernel 1: XW = X @ W.T (bf16 lane-dense panel), large row tiles ----
    t1_cap = max(256, ((6 << 20) // max(f_in_p * 4, 1)) // 256 * 256)
    t1 = _pick_tile(n_pad, min(4096, t1_cap))
    k1_bytes = 2 * t1 * f_in_p * 4 + 2 * t1 * f_out_p * 2 + 2 * f_in_p * f_out_p * 4
    xw = pl.pallas_call(
        _xw_kernel,
        out_shape=jax.ShapeDtypeStruct((n_pad, f_out_p), jnp.bfloat16),
        grid_spec=pltpu.PrefetchScalarGridSpec(
            num_scalar_prefetch=0,
            grid=(n_pad // t1,),
            in_specs=[
                pl.BlockSpec((t1, f_in_p), lambda i: (i, 0)),
                pl.BlockSpec((f_in_p, f_out_p), lambda i: (0, 0)),
            ],
            out_specs=pl.BlockSpec((t1, f_out_p), lambda i: (i, 0)),
        ),
        compiler_params=pltpu.CompilerParams(
            dimension_semantics=("parallel",),
            vmem_limit_bytes=int(min(vmem_budget,
                                     max(32 << 20, k1_bytes + (8 << 20)))),
        ),
    )(x_p, w_t_p)

    # ---- kernel 2: out = relu((A @ XW) / deg + b), tiled over (dst, src) ----
    tm_eff = _pick_tile(n_pad, tm)
    tk_eff = _pick_tile(n_pad, tk)
    # keep >= 2 destination-row tiles so v7x's two TensorCores both get work
    if n_pad // tm_eff < 2 and tm_eff > 256:
        tm_eff = _pick_tile(n_pad, tm_eff // 2)

    def _k2_bytes(tm_, tk_, resident_):
        a_b = 2 * tm_ * tk_                                      # int8, 2 bufs
        xw_b = 2 * n_pad * f_out_p * 2 if resident_ else 2 * tk_ * f_out_p * 2
        o_b = 2 * tm_ * f_out_p * 4                              # f32 out block
        return a_b + xw_b + o_b + tm_ * 4 + 2 * f_out_p * 4

    headroom = 4 << 20
    xw_resident = _k2_bytes(tm_eff, tk_eff, True) + headroom <= vmem_budget
    if not xw_resident:
        while (_k2_bytes(tm_eff, tk_eff, False) + headroom > vmem_budget
               and tk_eff > 256):
            tk_eff = _pick_tile(n_pad, tk_eff // 2)
        while (_k2_bytes(tm_eff, tk_eff, False) + headroom > vmem_budget
               and tm_eff > 256):
            tm_eff = _pick_tile(n_pad, tm_eff // 2)

    if xw_resident:
        xw_spec = pl.BlockSpec((n_pad, f_out_p), lambda i, k: (0, 0))
    else:
        xw_spec = pl.BlockSpec((tk_eff, f_out_p), lambda i, k: (k, 0))

    kernel2 = functools.partial(
        _gcn_agg_kernel, tk=tk_eff, n_valid=N,
        mask_cols=mask_cols, xw_resident=xw_resident)

    vmem_limit2 = int(min(vmem_budget,
                          max(32 << 20,
                              _k2_bytes(tm_eff, tk_eff, xw_resident) + (8 << 20))))

    out = pl.pallas_call(
        kernel2,
        out_shape=jax.ShapeDtypeStruct((n_pad, f_out_p), jnp.float32),
        grid_spec=pltpu.PrefetchScalarGridSpec(
            num_scalar_prefetch=0,
            grid=(n_pad // tm_eff, n_pad // tk_eff),  # (dst-row tiles, src reduction)
            in_specs=[
                pl.BlockSpec((tm_eff, tk_eff), lambda i, k: (i, k)),  # A tile (int8)
                xw_spec,                                              # XW panel (bf16)
                pl.BlockSpec((1, f_out_p), lambda i, k: (0, 0)),      # bias (resident)
            ],
            out_specs=pl.BlockSpec((tm_eff, f_out_p), lambda i, k: (i, 0)),
            scratch_shapes=[pltpu.VMEM((tm_eff, 1), jnp.float32)],    # in-degree acc
        ),
        compiler_params=pltpu.CompilerParams(
            dimension_semantics=("parallel", "arbitrary"),
            vmem_limit_bytes=vmem_limit2,
        ),
    )(adj_s, xw, b_p)

    return out[:N, :f_out]


if __name__ == "__main__":
    def _reference(adj_i8, x, weight, bias):
        a = adj_i8.astype(jnp.float32)
        deg = jnp.maximum(jnp.sum(a, axis=1, keepdims=True), 1.0)
        agg = (a @ x) / deg
        return jnp.maximum(agg @ weight.T + bias, 0.0)

    def _run_case(n, in_feats, out_feats):
        key = jax.random.PRNGKey(0)
        k_x, k_adj, k_w, k_b = jax.random.split(key, 4)
        x = jax.random.normal(k_x, (n, in_feats), dtype=jnp.float32)
        # adjacency built directly as int8 (0/1) -> no wrapper-side O(N^2) cast
        adj = (jax.random.uniform(k_adj, (n, n)) < 0.3).astype(jnp.int8)
        bound = 1.0 / float(in_feats) ** 0.5
        weight = jax.random.uniform(k_w, (out_feats, in_feats),
                                    minval=-bound, maxval=bound, dtype=jnp.float32)
        bias = jax.random.uniform(k_b, (out_feats,),
                                  minval=-bound, maxval=bound, dtype=jnp.float32)

        out = gcn_layer(adj, x, weight, bias)
        jax.block_until_ready(out)
        ref = _reference(adj, x, weight, bias)
        assert out.shape == ref.shape, f"shape mismatch: {out.shape} vs {ref.shape}"
        err = jnp.max(jnp.abs(out - ref))
        assert jnp.allclose(out, ref, atol=2e-2, rtol=2e-2), (
            f"mismatch vs reference (N={n}): max abs err {err}")

    # tiny graph (padded path): 16 nodes, in_feats=8, out_feats=16
    _run_case(16, 8, 16)
    # multiple-of-256 graph: no adjacency padding, resident XW panel, 2 row tiles
    _run_case(512, 32, 64)

    print("KERNEL_OK")
</pallas_src>

<mosaic_0001>
module attributes {stable_mosaic.version = 11 : i64} {
  func.func @_xw_kernel(%arg0: i32, %arg1: memref<256x128xf32, #tpu.memory_space<vmem>>, %arg2: memref<128x128xf32, #tpu.memory_space<vmem>>, %arg3: memref<256x128xbf16, #tpu.memory_space<vmem>>) attributes {dimension_semantics = [#tpu.dimension_semantics<parallel>], iteration_bounds = array<i64: 1>, scalar_prefetch = 0 : i64, scratch_operands = 0 : i64, tpu.core_type = #tpu.core_type<tc>, window_params = [{transform_indices = @transform_0, window_bounds = array<i64: 256, 128>}, {pipeline_mode = #tpu.pipeline_mode<synchronous>, transform_indices = @transform_1, window_bounds = array<i64: 128, 128>}, {transform_indices = @transform_2, window_bounds = array<i64: 256, 128>}]} {
    %c0 = arith.constant 0 : index
    %c0_0 = arith.constant 0 : index
    %0 = vector.load %arg1[%c0, %c0_0] : memref<256x128xf32, #tpu.memory_space<vmem>>, vector<256x128xf32>
    %c0_1 = arith.constant 0 : index
    %c0_2 = arith.constant 0 : index
    %1 = vector.load %arg2[%c0_1, %c0_2] : memref<128x128xf32, #tpu.memory_space<vmem>>, vector<128x128xf32>
    %cst = arith.constant dense<0.000000e+00> : vector<256x128xf32>
    %2 = tpu.matmul %0, %1, %cst {dimension_numbers = #tpu.dot_dimension_numbers<[1], [0], [0], [1], [0, 0, 1, 1], [], []>} : vector<256x128xf32>, vector<128x128xf32>, vector<256x128xf32> -> vector<256x128xf32>
    %3 = arith.truncf %2 : vector<256x128xf32> to vector<256x128xbf16>
    %c0_3 = arith.constant 0 : index
    %c0_4 = arith.constant 0 : index
    %4 = vector.load %arg3[%c0_3, %c0_4] : memref<256x128xbf16, #tpu.memory_space<vmem>>, vector<256x128xbf16>
    tpu.vector_store %arg3[%c0_3, %c0_4], %3 {strides = array<i32>} : memref<256x128xbf16, #tpu.memory_space<vmem>>, vector<256x128xbf16>,
    return
  }
  func.func @transform_0(%arg0: i32) -> (i32, i32) {
    %c0_i32 = arith.constant 0 : i32
    %c0_i32_0 = arith.constant 0 : i32
    return %arg0, %c0_i32 : i32, i32
  }
  func.func @transform_1(%arg0: i32) -> (i32, i32) {
    %c0_i32 = arith.constant 0 : i32
    %c0_i32_0 = arith.constant 0 : i32
    %c0_i32_1 = arith.constant 0 : i32
    return %c0_i32, %c0_i32_0 : i32, i32
  }
  func.func @transform_2(%arg0: i32) -> (i32, i32) {
    %c0_i32 = arith.constant 0 : i32
    %c0_i32_0 = arith.constant 0 : i32
    return %arg0, %c0_i32 : i32, i32
  }
}

module attributes {stable_mosaic.version = 11 : i64} {
  func.func @_gcn_agg_kernel(%arg0: i32, %arg1: i32, %arg2: memref<256x256xi8, #tpu.memory_space<vmem>>, %arg3: memref<256x128xbf16, #tpu.memory_space<vmem>>, %arg4: memref<1x128xf32, #tpu.memory_space<vmem>>, %arg5: memref<256x128xf32, #tpu.memory_space<vmem>>, %arg6: memref<256x1xf32, #tpu.memory_space<vmem>>) attributes {dimension_semantics = [#tpu.dimension_semantics<parallel>, #tpu.dimension_semantics<arbitrary>], iteration_bounds = array<i64: 1, 1>, scalar_prefetch = 0 : i64, scratch_operands = 1 : i64, tpu.core_type = #tpu.core_type<tc>, window_params = [{transform_indices = @transform_0, window_bounds = array<i64: 256, 256>}, {pipeline_mode = #tpu.pipeline_mode<synchronous>, transform_indices = @transform_1, window_bounds = array<i64: 256, 128>}, {pipeline_mode = #tpu.pipeline_mode<synchronous>, transform_indices = @transform_2, window_bounds = array<i64: 1, 128>}, {transform_indices = @transform_3, window_bounds = array<i64: 256, 128>}]} {
    %c0_i32 = arith.constant 0 : i32
    %0 = arith.cmpi eq, %arg1, %c0_i32 : i32
    %1 = arith.extui %0 : i1 to i32
    %c0_i32_0 = arith.constant 0 : i32
    %2 = arith.cmpi ne, %1, %c0_i32_0 : i32
    scf.if %2 {
      %cst_14 = arith.constant 0.000000e+00 : f32
      %22 = vector.broadcast %cst_14 : f32 to vector<256x128xf32>
      %c0_15 = arith.constant 0 : index
      %c0_16 = arith.constant 0 : index
      %23 = vector.load %arg5[%c0_15, %c0_16] : memref<256x128xf32, #tpu.memory_space<vmem>>, vector<256x128xf32>
      tpu.vector_store %arg5[%c0_15, %c0_16], %22 {strides = array<i32>} : memref<256x128xf32, #tpu.memory_space<vmem>>, vector<256x128xf32>,
      %cst_17 = arith.constant 0.000000e+00 : f32
      %24 = vector.broadcast %cst_17 : f32 to vector<256x1xf32>
      %c0_18 = arith.constant 0 : index
      %c0_19 = arith.constant 0 : index
      %25 = vector.load %arg6[%c0_18, %c0_19] : memref<256x1xf32, #tpu.memory_space<vmem>>, vector<256x1xf32>
      tpu.vector_store %arg6[%c0_18, %c0_19], %24 {strides = array<i32>} : memref<256x1xf32, #tpu.memory_space<vmem>>, vector<256x1xf32>,
    } else {
    }
    %c0 = arith.constant 0 : index
    %c0_1 = arith.constant 0 : index
    %3 = vector.load %arg2[%c0, %c0_1] : memref<256x256xi8, #tpu.memory_space<vmem>>, vector<256x256xi8>
    %4 = arith.sitofp %3 : vector<256x256xi8> to vector<256x256xbf16>
    %c256_i32 = arith.constant 256 : i32
    %5 = arith.muli %arg1, %c256_i32 : i32
    %6 = tpu.assume_multiple %5, 256 : i32
    %7 = arith.index_cast %6 : i32 to index
    %c0_2 = arith.constant 0 : index
    %8 = vector.load %arg3[%7, %c0_2] : memref<256x128xbf16, #tpu.memory_space<vmem>>, vector<256x128xbf16>
    %c0_3 = arith.constant 0 : index
    %c0_4 = arith.constant 0 : index
    %9 = vector.load %arg5[%c0_3, %c0_4] : memref<256x128xf32, #tpu.memory_space<vmem>>, vector<256x128xf32>
    %cst = arith.constant dense<0.000000e+00> : vector<256x128xf32>
    %10 = tpu.matmul %4, %8, %cst {dimension_numbers = #tpu.dot_dimension_numbers<[1], [0], [0], [1], [0, 0, 1, 1], [], []>} : vector<256x256xbf16>, vector<256x128xbf16>, vector<256x128xf32> -> vector<256x128xf32>
    %11 = arith.addf %9, %10 : vector<256x128xf32>
    %c0_5 = arith.constant 0 : index
    %c0_6 = arith.constant 0 : index
    %12 = vector.load %arg5[%c0_5, %c0_6] : memref<256x128xf32, #tpu.memory_space<vmem>>, vector<256x128xf32>
    tpu.vector_store %arg5[%c0_5, %c0_6], %11 {strides = array<i32>} : memref<256x128xf32, #tpu.memory_space<vmem>>, vector<256x128xf32>,
    %c0_7 = arith.constant 0 : index
    %c0_8 = arith.constant 0 : index
    %13 = vector.load %arg6[%c0_7, %c0_8] : memref<256x1xf32, #tpu.memory_space<vmem>>, vector<256x1xf32>
    %14 = arith.extf %4 : vector<256x256xbf16> to vector<256x256xf32>
    %cst_9 = arith.constant dense<0.000000e+00> : vector<256xf32>
    %15 = vector.multi_reduction <add>, %14, %cst_9 [1] : vector<256x256xf32> to vector<256xf32>
    %16 = vector.shape_cast %15 : vector<256xf32> to vector<256x1xf32>
    %17 = arith.addf %13, %16 : vector<256x1xf32>
    %c0_10 = arith.constant 0 : index
    %c0_11 = arith.constant 0 : index
    %18 = vector.load %arg6[%c0_10, %c0_11] : memref<256x1xf32, #tpu.memory_space<vmem>>, vector<256x1xf32>
    tpu.vector_store %arg6[%c0_10, %c0_11], %17 {strides = array<i32>} : memref<256x1xf32, #tpu.memory_space<vmem>>, vector<256x1xf32>,
    %c0_i32_12 = arith.constant 0 : i32
    %19 = arith.cmpi eq, %arg1, %c0_i32_12 : i32
    %20 = arith.extui %19 : i1 to i32
    %c0_i32_13 = arith.constant 0 : i32
    %21 = arith.cmpi ne, %20, %c0_i32_13 : i32
    scf.if %21 {
      %c0_14 = arith.constant 0 : index
      %c0_15 = arith.constant 0 : index
      %22 = vector.load %arg6[%c0_14, %c0_15] : memref<256x1xf32, #tpu.memory_space<vmem>>, vector<256x1xf32>
      %cst_16 = arith.constant 1.000000e+00 : f32
      %23 = vector.broadcast %cst_16 : f32 to vector<256x1xf32>
      %24 = arith.maximumf %22, %23 : vector<256x1xf32>
      %25 = tpu.reciprocal %24 {approx = true} : vector<256x1xf32> -> vector<256x1xf32>
      %c0_17 = arith.constant 0 : index
      %c0_18 = arith.constant 0 : index
      %26 = vector.load %arg5[%c0_17, %c0_18] : memref<256x128xf32, #tpu.memory_space<vmem>>, vector<256x128xf32>
      %27 = vector.broadcast %25 : vector<256x1xf32> to vector<256x128xf32>
      %28 = arith.mulf %26, %27 : vector<256x128xf32>
      %c0_19 = arith.constant 0 : index
      %c0_20 = arith.constant 0 : index
      %29 = vector.load %arg4[%c0_19, %c0_20] : memref<1x128xf32, #tpu.memory_space<vmem>>, vector<1x128xf32>
      %30 = vector.broadcast %29 : vector<1x128xf32> to vector<256x128xf32>
      %31 = arith.addf %28, %30 : vector<256x128xf32>
      %cst_21 = arith.constant 0.000000e+00 : f32
      %32 = vector.broadcast %cst_21 : f32 to vector<256x128xf32>
      %33 = arith.maximumf %31, %32 : vector<256x128xf32>
      %c0_22 = arith.constant 0 : index
      %c0_23 = arith.constant 0 : index
      %34 = vector.load %arg5[%c0_22, %c0_23] : memref<256x128xf32, #tpu.memory_space<vmem>>, vector<256x128xf32>
      tpu.vector_store %arg5[%c0_22, %c0_23], %33 {strides = array<i32>} : memref<256x128xf32, #tpu.memory_space<vmem>>, vector<256x128xf32>,
    } else {
    }
    return
  }
  func.func @transform_0(%arg0: i32, %arg1: i32) -> (i32, i32) {
    %c0_i32 = arith.constant 0 : i32
    return %arg0, %arg1 : i32, i32
  }
  func.func @transform_1(%arg0: i32, %arg1: i32) -> (i32, i32) {
    %c0_i32 = arith.constant 0 : i32
    %c0_i32_0 = arith.constant 0 : i32
    %c0_i32_1 = arith.constant 0 : i32
    return %c0_i32, %c0_i32_0 : i32, i32
  }
  func.func @transform_2(%arg0: i32, %arg1: i32) -> (i32, i32) {
    %c0_i32 = arith.constant 0 : i32
    %c0_i32_0 = arith.constant 0 : i32
    %c0_i32_1 = arith.constant 0 : i32
    return %c0_i32, %c0_i32_0 : i32, i32
  }
  func.func @transform_3(%arg0: i32, %arg1: i32) -> (i32, i32) {
    %c0_i32 = arith.constant 0 : i32
    %c0_i32_0 = arith.constant 0 : i32
    return %arg0, %c0_i32 : i32, i32
  }
}

</mosaic_0001>

<llo_original>
// kernel: gcn_layer.2
$region0: #{gcn_layer.2}
  #allocation0 [shape = 'u32[]', space=smem, size = 0x4, offset = 0x4, fixed_abs, tag = 'smem constant byte address 0x4 - core index']
  #allocation1 [shape = 'u32[144,128]{1,0:T(1,128)}', space=vmem, size = 0x12000, scoped, tag = 'internal scratch']
  %s0 = inlined_call_operand.vmem [shape: f32[256,128], index: 0, kind: input, shape index: {}]
  %s1 = inlined_call_operand.vmem [shape: f32[128,128], index: 1, kind: input, shape index: {}]
  %s2 = inlined_call_operand.vmem [shape: bf16[256,128], index: 2, kind: output, shape index: {}]
  %s3 = sld [smem:[#allocation0]]
  $region18: #{gcn_layer.2} parent=0
    _
  %s5 = ssub.s32 1, %s3
  %s6 = scalar_select 0, %s5, %s3
  // Predicated region
  $region2: #{gcn_layer.2} parent=0 // pred_check
    _
  $region3: #{gcn_layer.2} parent=0 // pred_check_branch
    %8 = sbr.rel (0) target = $region5
  $region4: #{gcn_layer.2} parent=0 // pred_region
    _
  $region5: #{gcn_layer.2} parent=0 // pred_fallthru
    _
  // Predicated region
  $region6: #{gcn_layer.2} parent=0 // pred_check
    _
  $region7: #{gcn_layer.2} parent=0 // pred_check_branch
    %10 = sbr.rel (0) target = $region9
  $region8: #{gcn_layer.2} parent=0 // pred_region
    _
  $region9: #{gcn_layer.2} parent=0 // pred_fallthru
    _
  %v11 = vld [vmem:[%s0] sm:$0xff]
  %v12 = vld [vmem:[%s0 + $0x8] sm:$0xff]
  %v13 = vld [vmem:[%s0 + $0x10] sm:$0xff]
  %v14 = vld [vmem:[%s0 + $0x18] sm:$0xff]
  %v15 = vld [vmem:[%s0 + $0x20] sm:$0xff]
  %v16 = vld [vmem:[%s0 + $0x28] sm:$0xff]
  %v17 = vld [vmem:[%s0 + $0x30] sm:$0xff]
  %v18 = vld [vmem:[%s0 + $0x38] sm:$0xff]
  %v19 = vld [vmem:[%s0 + $0x40] sm:$0xff]
  %v20 = vld [vmem:[%s0 + $0x48] sm:$0xff]
  %v21 = vld [vmem:[%s0 + $0x50] sm:$0xff]
  %v22 = vld [vmem:[%s0 + $0x58] sm:$0xff]
  %v23 = vld [vmem:[%s0 + $0x60] sm:$0xff]
  %v24 = vld [vmem:[%s0 + $0x68] sm:$0xff]
  %v25 = vld [vmem:[%s0 + $0x70] sm:$0xff]
  %v26 = vld [vmem:[%s0 + $0x78] sm:$0xff]
  %v27 = vld [vmem:[%s0 + $0x80] sm:$0xff]
  %v28 = vld [vmem:[%s0 + $0x88] sm:$0xff]
  %v29 = vld [vmem:[%s0 + $0x90] sm:$0xff]
  %v30 = vld [vmem:[%s0 + $0x98] sm:$0xff]
  %v31 = vld [vmem:[%s0 + $0xa0] sm:$0xff]
  %v32 = vld [vmem:[%s0 + $0xa8] sm:$0xff]
  %v33 = vld [vmem:[%s0 + $0xb0] sm:$0xff]
  %v34 = vld [vmem:[%s0 + $0xb8] sm:$0xff]
  %v35 = vld [vmem:[%s0 + $0xc0] sm:$0xff]
  %v36 = vld [vmem:[%s0 + $0xc8] sm:$0xff]
  %v37 = vld [vmem:[%s0 + $0xd0] sm:$0xff]
  %v38 = vld [vmem:[%s0 + $0xd8] sm:$0xff]
  %v39 = vld [vmem:[%s0 + $0xe0] sm:$0xff]
  %v40 = vld [vmem:[%s0 + $0xe8] sm:$0xff]
  %v41 = vld [vmem:[%s0 + $0xf0] sm:$0xff]
  %v42 = vld [vmem:[%s0 + $0xf8] sm:$0xff]
  %v43 = vld [vmem:[%s1] sm:$0xff]
  %v44 = vld [vmem:[%s1 + $0x8] sm:$0xff]
  %v45 = vld [vmem:[%s1 + $0x10] sm:$0xff]
  %v46 = vld [vmem:[%s1 + $0x18] sm:$0xff]
  %v47 = vld [vmem:[%s1 + $0x20] sm:$0xff]
  %v48 = vld [vmem:[%s1 + $0x28] sm:$0xff]
  %v49 = vld [vmem:[%s1 + $0x30] sm:$0xff]
  %v50 = vld [vmem:[%s1 + $0x38] sm:$0xff]
  %v51 = vld [vmem:[%s1 + $0x40] sm:$0xff]
  %v52 = vld [vmem:[%s1 + $0x48] sm:$0xff]
  %v53 = vld [vmem:[%s1 + $0x50] sm:$0xff]
  %v54 = vld [vmem:[%s1 + $0x58] sm:$0xff]
  %v55 = vld [vmem:[%s1 + $0x60] sm:$0xff]
  %v56 = vld [vmem:[%s1 + $0x68] sm:$0xff]
  %v57 = vld [vmem:[%s1 + $0x70] sm:$0xff]
  %v58 = vld [vmem:[%s1 + $0x78] sm:$0xff]
  %59 = vmatprep.subr.mxu0 0.0
  %60 = vmatpush1.msra.mxu0 %v43
  %61 = vmatprep.subr.mxu0 0.0
  %62 = vmatpush1.msra.mxu0 %v44
  %63 = vmatprep.subr.mxu0 0.0
  %64 = vmatpush1.msra.mxu0 %v45
  %65 = vmatprep.subr.mxu0 0.0
  %66 = vmatpush1.msra.mxu0 %v46
  %67 = vmatprep.subr.mxu0 0.0
  %68 = vmatpush1.msra.mxu0 %v47
  %69 = vmatprep.subr.mxu0 0.0
  %70 = vmatpush1.msra.mxu0 %v48
  %71 = vmatprep.subr.mxu0 0.0
  %72 = vmatpush1.msra.mxu0 %v49
  %73 = vmatprep.subr.mxu0 0.0
  %74 = vmatpush1.msra.mxu0 %v50
  %75 = vmatprep.subr.mxu0 0.0
  %76 = vmatpush1.msra.mxu0 %v51
  %77 = vmatprep.subr.mxu0 0.0
  %78 = vmatpush1.msra.mxu0 %v52
  %79 = vmatprep.subr.mxu0 0.0
  %80 = vmatpush1.msra.mxu0 %v53
  %81 = vmatprep.subr.mxu0 0.0
  %82 = vmatpush1.msra.mxu0 %v54
  %83 = vmatprep.subr.mxu0 0.0
  %84 = vmatpush1.msra.mxu0 %v55
  %85 = vmatprep.subr.mxu0 0.0
  %86 = vmatpush1.msra.mxu0 %v56
  %87 = vmatprep.subr.mxu0 0.0
  %88 = vmatpush1.msra.mxu0 %v57
  %89 = vmatprep.subr.mxu0 0.0
  %90 = vmatpush1.msra.mxu0 %v58
  %91 = vmatprep.subr.mxu0 0.0
  %92 = vmatpush1.msra.mxu0 0.0
  %93 = vmatprep.subr.mxu0 0.0
  %94 = vmatpush1.msra.mxu0 0.0
  %95 = vmatprep.subr.mxu0 0.0
  %96 = vmatpush1.msra.mxu0 0.0
  %97 = vmatprep.subr.mxu0 0.0
  %98 = vmatpush1.msra.mxu0 0.0
  %99 = vmatprep.subr.mxu0 0.0
  %100 = vmatpush1.msra.mxu0 0.0
  %101 = vmatprep.subr.mxu0 0.0
  %102 = vmatpush1.msra.mxu0 0.0
  %103 = vmatprep.subr.mxu0 0.0
  %104 = vmatpush1.msra.mxu0 0.0
  %105 = vmatprep.subr.mxu0 0.0
  %106 = vmatpush1.msra.mxu0 0.0
  %107 = vmatprep.subr.mxu0 0.0
  %108 = vmatpush1.msra.mxu0 0.0
  %109 = vmatprep.subr.mxu0 0.0
  %110 = vmatpush1.msra.mxu0 0.0
  %111 = vmatprep.subr.mxu0 0.0
  %112 = vmatpush1.msra.mxu0 0.0
  %113 = vmatprep.subr.mxu0 0.0
  %114 = vmatpush1.msra.mxu0 0.0
  %115 = vmatprep.subr.mxu0 0.0
  %116 = vmatpush1.msra.mxu0 0.0
  %117 = vmatprep.subr.mxu0 0.0
  %118 = vmatpush1.msra.mxu0 0.0
  %119 = vmatprep.subr.mxu0 0.0
  %120 = vmatpush1.msra.mxu0 0.0
  %121 = vmatprep.subr.mxu0 0.0
  %122 = vmatpush1.msra.mxu0 0.0
  %123 = vmatprep.mubr.f32.mxu0 0.0
  %124 = vmatmul.mubr.f32.gmra.mrb[0].mxu0 %v11
  %v125 = vpop.f32.mrb[0].mxu0
  %v126 = vadd.f32 0.0, %v125
  %v127 = vpop.f32.mrb[0].mxu0
  %128 = vmatprep.mubr.f32.mxu0 0.0
  %129 = vmatmul.mubr.f32.gmra.mrb[0].mxu0 %v12
  %v130 = vpop.f32.mrb[0].mxu0
  %v131 = vadd.f32 0.0, %v130
  %v132 = vpop.f32.mrb[0].mxu0
  %133 = vmatprep.mubr.f32.mxu0 0.0
  %134 = vmatmul.mubr.f32.gmra.mrb[0].mxu0 %v13
  %v135 = vpop.f32.mrb[0].mxu0
  %v136 = vadd.f32 0.0, %v135
  %v137 = vpop.f32.mrb[0].mxu0
  %138 = vmatprep.mubr.f32.mxu0 0.0
  %139 = vmatmul.mubr.f32.gmra.mrb[0].mxu0 %v14
  %v140 = vpop.f32.mrb[0].mxu0
  %v141 = vadd.f32 0.0, %v140
  %v142 = vpop.f32.mrb[0].mxu0
  %143 = vmatprep.mubr.f32.mxu0 0.0
  %144 = vmatmul.mubr.f32.gmra.mrb[0].mxu0 %v15
  %v145 = vpop.f32.mrb[0].mxu0
  %v146 = vadd.f32 0.0, %v145
  %v147 = vpop.f32.mrb[0].mxu0
  %148 = vmatprep.mubr.f32.mxu0 0.0
  %149 = vmatmul.mubr.f32.gmra.mrb[0].mxu0 %v16
  %v150 = vpop.f32.mrb[0].mxu0
  %v151 = vadd.f32 0.0, %v150
  %v152 = vpop.f32.mrb[0].mxu0
  %153 = vmatprep.mubr.f32.mxu0 0.0
  %154 = vmatmul.mubr.f32.gmra.mrb[0].mxu0 %v17
  %v155 = vpop.f32.mrb[0].mxu0
  %v156 = vadd.f32 0.0, %v155
  %v157 = vpop.f32.mrb[0].mxu0
  %158 = vmatprep.mubr.f32.mxu0 0.0
  %159 = vmatmul.mubr.f32.gmra.mrb[0].mxu0 %v18
  %v160 = vpop.f32.mrb[0].mxu0
  %v161 = vadd.f32 0.0, %v160
  %v162 = vpop.f32.mrb[0].mxu0
  %163 = vmatprep.mubr.f32.mxu0 0.0
  %164 = vmatmul.mubr.f32.gmra.mrb[0].mxu0 %v19
  %v165 = vpop.f32.mrb[0].mxu0
  %v166 = vadd.f32 0.0, %v165
  %v167 = vpop.f32.mrb[0].mxu0
  %168 = vmatprep.mubr.f32.mxu0 0.0
  %169 = vmatmul.mubr.f32.gmra.mrb[0].mxu0 %v20
  %v170 = vpop.f32.mrb[0].mxu0
  %v171 = vadd.f32 0.0, %v170
  %v172 = vpop.f32.mrb[0].mxu0
  %173 = vmatprep.mubr.f32.mxu0 0.0
  %174 = vmatmul.mubr.f32.gmra.mrb[0].mxu0 %v21
  %v175 = vpop.f32.mrb[0].mxu0
  %v176 = vadd.f32 0.0, %v175
  %v177 = vpop.f32.mrb[0].mxu0
  %178 = vmatprep.mubr.f32.mxu0 0.0
  %179 = vmatmul.mubr.f32.gmra.mrb[0].mxu0 %v22
  %v180 = vpop.f32.mrb[0].mxu0
  %v181 = vadd.f32 0.0, %v180
  %v182 = vpop.f32.mrb[0].mxu0
  %183 = vmatprep.mubr.f32.mxu0 0.0
  %184 = vmatmul.mubr.f32.gmra.mrb[0].mxu0 %v23
  %v185 = vpop.f32.mrb[0].mxu0
  %v186 = vadd.f32 0.0, %v185
  %v187 = vpop.f32.mrb[0].mxu0
  %188 = vmatprep.mubr.f32.mxu0 0.0
  %189 = vmatmul.mubr.f32.gmra.mrb[0].mxu0 %v24
  %v190 = vpop.f32.mrb[0].mxu0
  %v191 = vadd.f32 0.0, %v190
  %v192 = vpop.f32.mrb[0].mxu0
  %193 = vmatprep.mubr.f32.mxu0 0.0
  %194 = vmatmul.mubr.f32.gmra.mrb[0].mxu0 %v25
  %v195 = vpop.f32.mrb[0].mxu0
  %v196 = vadd.f32 0.0, %v195
  %v197 = vpop.f32.mrb[0].mxu0
  %198 = vmatprep.mubr.f32.mxu0 0.0
  %199 = vmatmul.mubr.f32.gmra.mrb[0].mxu0 %v26
  %v200 = vpop.f32.mrb[0].mxu0
  %v201 = vadd.f32 0.0, %v200
  %v202 = vpop.f32.mrb[0].mxu0
  %203 = vmatprep.mubr.f32.mxu0 0.0
  %204 = vmatmul.mubr.f32.gmra.mrb[0].mxu0 %v27
  %v205 = vpop.f32.mrb[0].mxu0
  %v206 = vadd.f32 0.0, %v205
  %v207 = vpop.f32.mrb[0].mxu0
  %208 = vmatprep.mubr.f32.mxu0 0.0
  %209 = vmatmul.mubr.f32.gmra.mrb[0].mxu0 %v28
  %v210 = vpop.f32.mrb[0].mxu0
  %v211 = vadd.f32 0.0, %v210
  %v212 = vpop.f32.mrb[0].mxu0
  %213 = vmatprep.mubr.f32.mxu0 0.0
  %214 = vmatmul.mubr.f32.gmra.mrb[0].mxu0 %v29
  %v215 = vpop.f32.mrb[0].mxu0
  %v216 = vadd.f32 0.0, %v215
  %v217 = vpop.f32.mrb[0].mxu0
  %218 = vmatprep.mubr.f32.mxu0 0.0
  %219 = vmatmul.mubr.f32.gmra.mrb[0].mxu0 %v30
  %v220 = vpop.f32.mrb[0].mxu0
  %v221 = vadd.f32 0.0, %v220
  %v222 = vpop.f32.mrb[0].mxu0
  %223 = vmatprep.mubr.f32.mxu0 0.0
  %224 = vmatmul.mubr.f32.gmra.mrb[0].mxu0 %v31
  %v225 = vpop.f32.mrb[0].mxu0
  %v226 = vadd.f32 0.0, %v225
  %v227 = vpop.f32.mrb[0].mxu0
  %228 = vmatprep.mubr.f32.mxu0 0.0
  %229 = vmatmul.mubr.f32.gmra.mrb[0].mxu0 %v32
  %v230 = vpop.f32.mrb[0].mxu0
  %v231 = vadd.f32 0.0, %v230
  %v232 = vpop.f32.mrb[0].mxu0
  %233 = vmatprep.mubr.f32.mxu0 0.0
  %234 = vmatmul.mubr.f32.gmra.mrb[0].mxu0 %v33
  %v235 = vpop.f32.mrb[0].mxu0
  %v236 = vadd.f32 0.0, %v235
  %v237 = vpop.f32.mrb[0].mxu0
  %238 = vmatprep.mubr.f32.mxu0 0.0
  %239 = vmatmul.mubr.f32.gmra.mrb[0].mxu0 %v34
  %v240 = vpop.f32.mrb[0].mxu0
  %v241 = vadd.f32 0.0, %v240
  %v242 = vpop.f32.mrb[0].mxu0
  %243 = vmatprep.mubr.f32.mxu0 0.0
  %244 = vmatmul.mubr.f32.gmra.mrb[0].mxu0 %v35
  %v245 = vpop.f32.mrb[0].mxu0
  %v246 = vadd.f32 0.0, %v245
  %v247 = vpop.f32.mrb[0].mxu0
  %248 = vmatprep.mubr.f32.mxu0 0.0
  %249 = vmatmul.mubr.f32.gmra.mrb[0].mxu0 %v36
  %v250 = vpop.f32.mrb[0].mxu0
  %v251 = vadd.f32 0.0, %v250
  %v252 = vpop.f32.mrb[0].mxu0
  %253 = vmatprep.mubr.f32.mxu0 0.0
  %254 = vmatmul.mubr.f32.gmra.mrb[0].mxu0 %v37
  %v255 = vpop.f32.mrb[0].mxu0
  %v256 = vadd.f32 0.0, %v255
  %v257 = vpop.f32.mrb[0].mxu0
  %258 = vmatprep.mubr.f32.mxu0 0.0
  %259 = vmatmul.mubr.f32.gmra.mrb[0].mxu0 %v38
  %v260 = vpop.f32.mrb[0].mxu0
  %v261 = vadd.f32 0.0, %v260
  %v262 = vpop.f32.mrb[0].mxu0
  %263 = vmatprep.mubr.f32.mxu0 0.0
  %264 = vmatmul.mubr.f32.gmra.mrb[0].mxu0 %v39
  %v265 = vpop.f32.mrb[0].mxu0
  %v266 = vadd.f32 0.0, %v265
  %v267 = vpop.f32.mrb[0].mxu0
  %268 = vmatprep.mubr.f32.mxu0 0.0
  %269 = vmatmul.mubr.f32.gmra.mrb[0].mxu0 %v40
  %v270 = vpop.f32.mrb[0].mxu0
  %v271 = vadd.f32 0.0, %v270
  %v272 = vpop.f32.mrb[0].mxu0
  %273 = vmatprep.mubr.f32.mxu0 0.0
  %274 = vmatmul.mubr.f32.gmra.mrb[0].mxu0 %v41
  %v275 = vpop.f32.mrb[0].mxu0
  %v276 = vadd.f32 0.0, %v275
  %v277 = vpop.f32.mrb[0].mxu0
  %278 = vmatprep.mubr.f32.mxu0 0.0
  %279 = vmatmul.mubr.f32.gmra.mrb[0].mxu0 %v42
  %v280 = vpop.f32.mrb[0].mxu0
  %v281 = vadd.f32 0.0, %v280
  %v282 = vpop.f32.mrb[0].mxu0
  %283 = vdwg.mxu0
  %v284 = vpack.c.bf16 %v131, %v126
  %v285 = vpack.c.bf16 %v141, %v136
  %v286 = vpack.c.bf16 %v151, %v146
  %v287 = vpack.c.bf16 %v161, %v156
  %v288 = vpack.c.bf16 %v171, %v166
  %v289 = vpack.c.bf16 %v181, %v176
  %v290 = vpack.c.bf16 %v191, %v186
  %v291 = vpack.c.bf16 %v201, %v196
  %v292 = vpack.c.bf16 %v211, %v206
  %v293 = vpack.c.bf16 %v221, %v216
  %v294 = vpack.c.bf16 %v231, %v226
  %v295 = vpack.c.bf16 %v241, %v236
  %v296 = vpack.c.bf16 %v251, %v246
  %v297 = vpack.c.bf16 %v261, %v256
  %v298 = vpack.c.bf16 %v271, %v266
  %v299 = vpack.c.bf16 %v281, %v276
  %v316 = vunpack.c.l.b16 %v284
  %v317 = vunpack.c.h.b16 %v284
  %v318 = vunpack.c.l.b16 %v285
  %v319 = vunpack.c.h.b16 %v285
  %v320 = vunpack.c.l.b16 %v286
  %v321 = vunpack.c.h.b16 %v286
  %v322 = vunpack.c.l.b16 %v287
  %v323 = vunpack.c.h.b16 %v287
  %v324 = vunpack.c.l.b16 %v288
  %v325 = vunpack.c.h.b16 %v288
  %v326 = vunpack.c.l.b16 %v289
  %v327 = vunpack.c.h.b16 %v289
  %v328 = vunpack.c.l.b16 %v290
  %v329 = vunpack.c.h.b16 %v290
  %v330 = vunpack.c.l.b16 %v291
  %v331 = vunpack.c.h.b16 %v291
  %v332 = vunpack.c.l.b16 %v292
  %v333 = vunpack.c.h.b16 %v292
  %v334 = vunpack.c.l.b16 %v293
  %v335 = vunpack.c.h.b16 %v293
  %v336 = vunpack.c.l.b16 %v294
  %v337 = vunpack.c.h.b16 %v294
  %v338 = vunpack.c.l.b16 %v295
  %v339 = vunpack.c.h.b16 %v295
  %v340 = vunpack.c.l.b16 %v296
  %v341 = vunpack.c.h.b16 %v296
  %v342 = vunpack.c.l.b16 %v297
  %v343 = vunpack.c.h.b16 %v297
  %v344 = vunpack.c.l.b16 %v298
  %v345 = vunpack.c.h.b16 %v298
  %v346 = vunpack.c.l.b16 %v299
  %v347 = vunpack.c.h.b16 %v299
  %v348 = vpack.c.b16 %v316, %v316
  %v349 = vpack.c.b16 %v317, %v317
  %v350 = vpack.c.b16 %v318, %v318
  %v351 = vpack.c.b16 %v319, %v319
  %v352 = vpack.c.b16 %v320, %v320
  %v353 = vpack.c.b16 %v321, %v321
  %v354 = vpack.c.b16 %v322, %v322
  %v355 = vpack.c.b16 %v323, %v323
  %v356 = vpack.c.b16 %v324, %v324
  %v357 = vpack.c.b16 %v325, %v325
  %v358 = vpack.c.b16 %v326, %v326
  %v359 = vpack.c.b16 %v327, %v327
  %v360 = vpack.c.b16 %v328, %v328
  %v361 = vpack.c.b16 %v329, %v329
  %v362 = vpack.c.b16 %v330, %v330
  %v363 = vpack.c.b16 %v331, %v331
  %v364 = vpack.c.b16 %v332, %v332
  %v365 = vpack.c.b16 %v333, %v333
  %v366 = vpack.c.b16 %v334, %v334
  %v367 = vpack.c.b16 %v335, %v335
  %v368 = vpack.c.b16 %v336, %v336
  %v369 = vpack.c.b16 %v337, %v337
  %v370 = vpack.c.b16 %v338, %v338
  %v371 = vpack.c.b16 %v339, %v339
  %v372 = vpack.c.b16 %v340, %v340
  %v373 = vpack.c.b16 %v341, %v341
  %v374 = vpack.c.b16 %v342, %v342
  %v375 = vpack.c.b16 %v343, %v343
  %v376 = vpack.c.b16 %v344, %v344
  %v377 = vpack.c.b16 %v345, %v345
  %v378 = vpack.c.b16 %v346, %v346
  %v379 = vpack.c.b16 %v347, %v347
  %412 = vst [vmem:[%s2] sm:$0xf] %v348
  %413 = vst [vmem:[%s2 + $0x4] sm:$0xf] %v349
  %414 = vst [vmem:[%s2 + $0x8] sm:$0xf] %v350
  %415 = vst [vmem:[%s2 + $0xc] sm:$0xf] %v351
  %416 = vst [vmem:[%s2 + $0x10] sm:$0xf] %v352
  %417 = vst [vmem:[%s2 + $0x14] sm:$0xf] %v353
  %418 = vst [vmem:[%s2 + $0x18] sm:$0xf] %v354
  %419 = vst [vmem:[%s2 + $0x1c] sm:$0xf] %v355
  %420 = vst [vmem:[%s2 + $0x20] sm:$0xf] %v356
  %421 = vst [vmem:[%s2 + $0x24] sm:$0xf] %v357
  %422 = vst [vmem:[%s2 + $0x28] sm:$0xf] %v358
  %423 = vst [vmem:[%s2 + $0x2c] sm:$0xf] %v359
  %424 = vst [vmem:[%s2 + $0x30] sm:$0xf] %v360
  %425 = vst [vmem:[%s2 + $0x34] sm:$0xf] %v361
  %426 = vst [vmem:[%s2 + $0x38] sm:$0xf] %v362
  %427 = vst [vmem:[%s2 + $0x3c] sm:$0xf] %v363
  %428 = vst [vmem:[%s2 + $0x40] sm:$0xf] %v364
  %429 = vst [vmem:[%s2 + $0x44] sm:$0xf] %v365
  %430 = vst [vmem:[%s2 + $0x48] sm:$0xf] %v366
  %431 = vst [vmem:[%s2 + $0x4c] sm:$0xf] %v367
  %432 = vst [vmem:[%s2 + $0x50] sm:$0xf] %v368
  %433 = vst [vmem:[%s2 + $0x54] sm:$0xf] %v369
  %434 = vst [vmem:[%s2 + $0x58] sm:$0xf] %v370
  %435 = vst [vmem:[%s2 + $0x5c] sm:$0xf] %v371
  %436 = vst [vmem:[%s2 + $0x60] sm:$0xf] %v372
  %437 = vst [vmem:[%s2 + $0x64] sm:$0xf] %v373
  %438 = vst [vmem:[%s2 + $0x68] sm:$0xf] %v374
  %439 = vst [vmem:[%s2 + $0x6c] sm:$0xf] %v375
  %440 = vst [vmem:[%s2 + $0x70] sm:$0xf] %v376
  %441 = vst [vmem:[%s2 + $0x74] sm:$0xf] %v377
  %442 = vst [vmem:[%s2 + $0x78] sm:$0xf] %v378
  %443 = vst [vmem:[%s2 + $0x7c] sm:$0xf] %v379
  // Predicated region
  $region10: #{gcn_layer.2} parent=0 // pred_check
    _
  $region11: #{gcn_layer.2} parent=0 // pred_check_branch
    %445 = sbr.rel (0) target = $region13
  $region12: #{gcn_layer.2} parent=0 // pred_region
    _
  $region13: #{gcn_layer.2} parent=0 // pred_fallthru
    _
  // Predicated region
  $region14: #{gcn_layer.2} parent=0 // pred_check
    _
  $region15: #{gcn_layer.2} parent=0 // pred_check_branch
    %447 = sbr.rel (0) target = $region17
  $region16: #{gcn_layer.2} parent=0 // pred_region
    _
  $region17: #{gcn_layer.2} parent=0 // pred_fallthru
    _

// kernel: gcn_layer.3
$region0: #{gcn_layer.3}
  #allocation0 [shape = 'u32[]', space=smem, size = 0x4, offset = 0x4, fixed_abs, tag = 'smem constant byte address 0x4 - core index']
  #allocation1 [shape = 'u32[144,128]{1,0:T(1,128)}', space=vmem, size = 0x12000, scoped, tag = 'internal scratch']
  #allocation2 [shape = 'f32[256,1]{1,0:T(8,128)}', space=vmem, size = 0x20000, scoped, tag = 'scratch operand']
  %s0 = inlined_call_operand.vmem [shape: s8[256,256], index: 0, kind: input, shape index: {}]
  %s1 = inlined_call_operand.vmem [shape: bf16[256,128], index: 1, kind: input, shape index: {}]
  %s2 = inlined_call_operand.vmem [shape: f32[1,128], index: 2, kind: input, shape index: {}]
  %s3 = inlined_call_operand.vmem [shape: f32[256,128], index: 3, kind: output, shape index: {}]
  %s4 = sld [smem:[#allocation0]]
  $region30: #{gcn_layer.3} parent=0
    _
  %s6 = ssub.s32 1, %s4
  %s7 = scalar_select 0, %s6, %s4
  // Predicated region
  $region2: #{gcn_layer.3} parent=0 // pred_check
    _
  $region3: #{gcn_layer.3} parent=0 // pred_check_branch
    %9 = sbr.rel (0) target = $region5
  $region4: #{gcn_layer.3} parent=0 // pred_region
    _
  $region5: #{gcn_layer.3} parent=0 // pred_fallthru
    _
  // Predicated region
  $region6: #{gcn_layer.3} parent=0 // pred_check
    _
  $region7: #{gcn_layer.3} parent=0 // pred_check_branch
    %11 = sbr.rel (0) target = $region9
  $region8: #{gcn_layer.3} parent=0 // pred_region
    _
  $region9: #{gcn_layer.3} parent=0 // pred_fallthru
    _
  // Predicated region
  $region10: #{gcn_layer.3} parent=0 // pred_check
    _
  $region11: #{gcn_layer.3} parent=0 // pred_check_branch
    %13 = sbr.rel (0) target = $region13
  $region12: #{gcn_layer.3} parent=0 // pred_region
    _
  $region13: #{gcn_layer.3} parent=0 // pred_fallthru
    _
  %p15 = scmp.eq.s32.totalorder 0, 0
  // Predicated region
  $region14: #{gcn_layer.3} parent=0 // pred_check
    %p16 = pneg %p15
  $region15: #{gcn_layer.3} parent=0 // pred_check_branch
    %18 = sbr.rel (%p16) target = $region17
  $region16: #{gcn_layer.3} parent=0 // pred_region
    %19 = vst [vmem:[%s3] sm:$0xff] 0.0
    %20 = vst [vmem:[%s3 + $0x8] sm:$0xff] 0.0
    %21 = vst [vmem:[%s3 + $0x10] sm:$0xff] 0.0
    %22 = vst [vmem:[%s3 + $0x18] sm:$0xff] 0.0
    %23 = vst [vmem:[%s3 + $0x20] sm:$0xff] 0.0
    %24 = vst [vmem:[%s3 + $0x28] sm:$0xff] 0.0
    %25 = vst [vmem:[%s3 + $0x30] sm:$0xff] 0.0
    %26 = vst [vmem:[%s3 + $0x38] sm:$0xff] 0.0
    %27 = vst [vmem:[%s3 + $0x40] sm:$0xff] 0.0
    %28 = vst [vmem:[%s3 + $0x48] sm:$0xff] 0.0
    %29 = vst [vmem:[%s3 + $0x50] sm:$0xff] 0.0
    %30 = vst [vmem:[%s3 + $0x58] sm:$0xff] 0.0
    %31 = vst [vmem:[%s3 + $0x60] sm:$0xff] 0.0
    %32 = vst [vmem:[%s3 + $0x68] sm:$0xff] 0.0
    %33 = vst [vmem:[%s3 + $0x70] sm:$0xff] 0.0
    %34 = vst [vmem:[%s3 + $0x78] sm:$0xff] 0.0
    %35 = vst [vmem:[%s3 + $0x80] sm:$0xff] 0.0
    %36 = vst [vmem:[%s3 + $0x88] sm:$0xff] 0.0
    %37 = vst [vmem:[%s3 + $0x90] sm:$0xff] 0.0
    %38 = vst [vmem:[%s3 + $0x98] sm:$0xff] 0.0
    %39 = vst [vmem:[%s3 + $0xa0] sm:$0xff] 0.0
    %40 = vst [vmem:[%s3 + $0xa8] sm:$0xff] 0.0
    %41 = vst [vmem:[%s3 + $0xb0] sm:$0xff] 0.0
    %42 = vst [vmem:[%s3 + $0xb8] sm:$0xff] 0.0
    %43 = vst [vmem:[%s3 + $0xc0] sm:$0xff] 0.0
    %44 = vst [vmem:[%s3 + $0xc8] sm:$0xff] 0.0
    %45 = vst [vmem:[%s3 + $0xd0] sm:$0xff] 0.0
    %46 = vst [vmem:[%s3 + $0xd8] sm:$0xff] 0.0
    %47 = vst [vmem:[%s3 + $0xe0] sm:$0xff] 0.0
    %48 = vst [vmem:[%s3 + $0xe8] sm:$0xff] 0.0
    %49 = vst [vmem:[%s3 + $0xf0] sm:$0xff] 0.0
    %50 = vst [vmem:[%s3 + $0xf8] sm:$0xff] 0.0
    %vm51 = vcmask 7168
    %52 = vst.msk [vmem:[#allocation2] sm:$0xff] %vm51, 0.0
    %53 = vst.msk [vmem:[#allocation2 + $0x8] sm:$0xff] %vm51, 0.0
    %54 = vst.msk [vmem:[#allocation2 + $0x10] sm:$0xff] %vm51, 0.0
    %55 = vst.msk [vmem:[#allocation2 + $0x18] sm:$0xff] %vm51, 0.0
    %56 = vst.msk [vmem:[#allocation2 + $0x20] sm:$0xff] %vm51, 0.0
    %57 = vst.msk [vmem:[#allocation2 + $0x28] sm:$0xff] %vm51, 0.0
    %58 = vst.msk [vmem:[#allocation2 + $0x30] sm:$0xff] %vm51, 0.0
    %59 = vst.msk [vmem:[#allocation2 + $0x38] sm:$0xff] %vm51, 0.0
    %60 = vst.msk [vmem:[#allocation2 + $0x40] sm:$0xff] %vm51, 0.0
    %61 = vst.msk [vmem:[#allocation2 + $0x48] sm:$0xff] %vm51, 0.0
    %62 = vst.msk [vmem:[#allocation2 + $0x50] sm:$0xff] %vm51, 0.0
    %63 = vst.msk [vmem:[#allocation2 + $0x58] sm:$0xff] %vm51, 0.0
    %64 = vst.msk [vmem:[#allocation2 + $0x60] sm:$0xff] %vm51, 0.0
    %65 = vst.msk [vmem:[#allocation2 + $0x68] sm:$0xff] %vm51, 0.0
    %66 = vst.msk [vmem:[#allocation2 + $0x70] sm:$0xff] %vm51, 0.0
    %67 = vst.msk [vmem:[#allocation2 + $0x78] sm:$0xff] %vm51, 0.0
    %68 = vst.msk [vmem:[#allocation2 + $0x80] sm:$0xff] %vm51, 0.0
    %69 = vst.msk [vmem:[#allocation2 + $0x88] sm:$0xff] %vm51, 0.0
    %70 = vst.msk [vmem:[#allocation2 + $0x90] sm:$0xff] %vm51, 0.0
    %71 = vst.msk [vmem:[#allocation2 + $0x98] sm:$0xff] %vm51, 0.0
    %72 = vst.msk [vmem:[#allocation2 + $0xa0] sm:$0xff] %vm51, 0.0
    %73 = vst.msk [vmem:[#allocation2 + $0xa8] sm:$0xff] %vm51, 0.0
    %74 = vst.msk [vmem:[#allocation2 + $0xb0] sm:$0xff] %vm51, 0.0
    %75 = vst.msk [vmem:[#allocation2 + $0xb8] sm:$0xff] %vm51, 0.0
    %76 = vst.msk [vmem:[#allocation2 + $0xc0] sm:$0xff] %vm51, 0.0
    %77 = vst.msk [vmem:[#allocation2 + $0xc8] sm:$0xff] %vm51, 0.0
    %78 = vst.msk [vmem:[#allocation2 + $0xd0] sm:$0xff] %vm51, 0.0
    %79 = vst.msk [vmem:[#allocation2 + $0xd8] sm:$0xff] %vm51, 0.0
    %80 = vst.msk [vmem:[#allocation2 + $0xe0] sm:$0xff] %vm51, 0.0
    %81 = vst.msk [vmem:[#allocation2 + $0xe8] sm:$0xff] %vm51, 0.0
    %82 = vst.msk [vmem:[#allocation2 + $0xf0] sm:$0xff] %vm51, 0.0
    %83 = vst.msk [vmem:[#allocation2 + $0xf8] sm:$0xff] %vm51, 0.0
  $region17: #{gcn_layer.3} parent=0 // pred_fallthru
    _
  %v84 = vld [vmem:[%s0] sm:$0xff]
  %v85 = vld [vmem:[%s0 + $0x8] sm:$0xff]
  %v86 = vld [vmem:[%s0 + $0x10] sm:$0xff]
  %v87 = vld [vmem:[%s0 + $0x18] sm:$0xff]
  %v88 = vld [vmem:[%s0 + $0x20] sm:$0xff]
  %v89 = vld [vmem:[%s0 + $0x28] sm:$0xff]
  %v90 = vld [vmem:[%s0 + $0x30] sm:$0xff]
  %v91 = vld [vmem:[%s0 + $0x38] sm:$0xff]
  %v92 = vld [vmem:[%s0 + $0x40] sm:$0xff]
  %v93 = vld [vmem:[%s0 + $0x48] sm:$0xff]
  %v94 = vld [vmem:[%s0 + $0x50] sm:$0xff]
  %v95 = vld [vmem:[%s0 + $0x58] sm:$0xff]
  %v96 = vld [vmem:[%s0 + $0x60] sm:$0xff]
  %v97 = vld [vmem:[%s0 + $0x68] sm:$0xff]
  %v98 = vld [vmem:[%s0 + $0x70] sm:$0xff]
  %v99 = vld [vmem:[%s0 + $0x78] sm:$0xff]
  %v100 = vunpack.c.l.s8.bf16 %v84
  %v101 = vunpack.c.l.s8.bf16 %v85
  %v102 = vunpack.c.h.s8.bf16 %v84
  %v103 = vunpack.c.h.s8.bf16 %v85
  %v104 = vunpack.c.l.s8.bf16 %v86
  %v105 = vunpack.c.l.s8.bf16 %v87
  %v106 = vunpack.c.h.s8.bf16 %v86
  %v107 = vunpack.c.h.s8.bf16 %v87
  %v108 = vunpack.c.l.s8.bf16 %v88
  %v109 = vunpack.c.l.s8.bf16 %v89
  %v110 = vunpack.c.h.s8.bf16 %v88
  %v111 = vunpack.c.h.s8.bf16 %v89
  %v112 = vunpack.c.l.s8.bf16 %v90
  %v113 = vunpack.c.l.s8.bf16 %v91
  %v114 = vunpack.c.h.s8.bf16 %v90
  %v115 = vunpack.c.h.s8.bf16 %v91
  %v116 = vunpack.c.l.s8.bf16 %v92
  %v117 = vunpack.c.l.s8.bf16 %v93
  %v118 = vunpack.c.h.s8.bf16 %v92
  %v119 = vunpack.c.h.s8.bf16 %v93
  %v120 = vunpack.c.l.s8.bf16 %v94
  %v121 = vunpack.c.l.s8.bf16 %v95
  %v122 = vunpack.c.h.s8.bf16 %v94
  %v123 = vunpack.c.h.s8.bf16 %v95
  %v124 = vunpack.c.l.s8.bf16 %v96
  %v125 = vunpack.c.l.s8.bf16 %v97
  %v126 = vunpack.c.h.s8.bf16 %v96
  %v127 = vunpack.c.h.s8.bf16 %v97
  %v128 = vunpack.c.l.s8.bf16 %v98
  %v129 = vunpack.c.l.s8.bf16 %v99
  %v130 = vunpack.c.h.s8.bf16 %v98
  %v131 = vunpack.c.h.s8.bf16 %v99
  %s132 = smul.u32 0, 256
  %s133 = sshra.s32 %s132, 3
  %s134 = sand.u32 %s132, 7
  %s135 = smul.addr %s133, 4
  %s136 = scalar_lea.vmem %s1, %s135
  %v137 = vld [vmem:[%s136] sm:$0xf]
  %v138 = vld [vmem:[%s136 + $0x4] sm:$0xf]
  %v139 = vld [vmem:[%s136 + $0x8] sm:$0xf]
  %v140 = vld [vmem:[%s136 + $0xc] sm:$0xf]
  %v141 = vld [vmem:[%s136 + $0x10] sm:$0xf]
  %v142 = vld [vmem:[%s136 + $0x14] sm:$0xf]
  %v143 = vld [vmem:[%s136 + $0x18] sm:$0xf]
  %v144 = vld [vmem:[%s136 + $0x1c] sm:$0xf]
  %v145 = vld [vmem:[%s136 + $0x20] sm:$0xf]
  %v146 = vld [vmem:[%s136 + $0x24] sm:$0xf]
  %v147 = vld [vmem:[%s136 + $0x28] sm:$0xf]
  %v148 = vld [vmem:[%s136 + $0x2c] sm:$0xf]
  %v149 = vld [vmem:[%s136 + $0x30] sm:$0xf]
  %v150 = vld [vmem:[%s136 + $0x34] sm:$0xf]
  %v151 = vld [vmem:[%s136 + $0x38] sm:$0xf]
  %v152 = vld [vmem:[%s136 + $0x3c] sm:$0xf]
  %v153 = vld [vmem:[%s136 + $0x40] sm:$0xf]
  %v154 = vld [vmem:[%s136 + $0x44] sm:$0xf]
  %v155 = vld [vmem:[%s136 + $0x48] sm:$0xf]
  %v156 = vld [vmem:[%s136 + $0x4c] sm:$0xf]
  %v157 = vld [vmem:[%s136 + $0x50] sm:$0xf]
  %v158 = vld [vmem:[%s136 + $0x54] sm:$0xf]
  %v159 = vld [vmem:[%s136 + $0x58] sm:$0xf]
  %v160 = vld [vmem:[%s136 + $0x5c] sm:$0xf]
  %v161 = vld [vmem:[%s136 + $0x60] sm:$0xf]
  %v162 = vld [vmem:[%s136 + $0x64] sm:$0xf]
  %v163 = vld [vmem:[%s136 + $0x68] sm:$0xf]
  %v164 = vld [vmem:[%s136 + $0x6c] sm:$0xf]
  %v165 = vld [vmem:[%s136 + $0x70] sm:$0xf]
  %v166 = vld [vmem:[%s136 + $0x74] sm:$0xf]
  %v167 = vld [vmem:[%s136 + $0x78] sm:$0xf]
  %v168 = vld [vmem:[%s136 + $0x7c] sm:$0xf]
  %v169 = vld [vmem:[%s3] sm:$0xff]
  %v170 = vld [vmem:[%s3 + $0x8] sm:$0xff]
  %v171 = vld [vmem:[%s3 + $0x10] sm:$0xff]
  %v172 = vld [vmem:[%s3 + $0x18] sm:$0xff]
  %v173 = vld [vmem:[%s3 + $0x20] sm:$0xff]
  %v174 = vld [vmem:[%s3 + $0x28] sm:$0xff]
  %v175 = vld [vmem:[%s3 + $0x30] sm:$0xff]
  %v176 = vld [vmem:[%s3 + $0x38] sm:$0xff]
  %v177 = vld [vmem:[%s3 + $0x40] sm:$0xff]
  %v178 = vld [vmem:[%s3 + $0x48] sm:$0xff]
  %v179 = vld [vmem:[%s3 + $0x50] sm:$0xff]
  %v180 = vld [vmem:[%s3 + $0x58] sm:$0xff]
  %v181 = vld [vmem:[%s3 + $0x60] sm:$0xff]
  %v182 = vld [vmem:[%s3 + $0x68] sm:$0xff]
  %v183 = vld [vmem:[%s3 + $0x70] sm:$0xff]
  %v184 = vld [vmem:[%s3 + $0x78] sm:$0xff]
  %v185 = vld [vmem:[%s3 + $0x80] sm:$0xff]
  %v186 = vld [vmem:[%s3 + $0x88] sm:$0xff]
  %v187 = vld [vmem:[%s3 + $0x90] sm:$0xff]
  %v188 = vld [vmem:[%s3 + $0x98] sm:$0xff]
  %v189 = vld [vmem:[%s3 + $0xa0] sm:$0xff]
  %v190 = vld [vmem:[%s3 + $0xa8] sm:$0xff]
  %v191 = vld [vmem:[%s3 + $0xb0] sm:$0xff]
  %v192 = vld [vmem:[%s3 + $0xb8] sm:$0xff]
  %v193 = vld [vmem:[%s3 + $0xc0] sm:$0xff]
  %v194 = vld [vmem:[%s3 + $0xc8] sm:$0xff]
  %v195 = vld [vmem:[%s3 + $0xd0] sm:$0xff]
  %v196 = vld [vmem:[%s3 + $0xd8] sm:$0xff]
  %v197 = vld [vmem:[%s3 + $0xe0] sm:$0xff]
  %v198 = vld [vmem:[%s3 + $0xe8] sm:$0xff]
  %v199 = vld [vmem:[%s3 + $0xf0] sm:$0xff]
  %v200 = vld [vmem:[%s3 + $0xf8] sm:$0xff]
  %v233 = vunpack.c.l.b16 %v137
  %v234 = vunpack.c.l.b16 %v138
  %v235 = vunpack.c.l.b16 %v139
  %v236 = vunpack.c.l.b16 %v140
  %v237 = vunpack.c.l.b16 %v141
  %v238 = vunpack.c.l.b16 %v142
  %v239 = vunpack.c.l.b16 %v143
  %v240 = vunpack.c.l.b16 %v144
  %v241 = vunpack.c.l.b16 %v145
  %v242 = vunpack.c.l.b16 %v146
  %v243 = vunpack.c.l.b16 %v147
  %v244 = vunpack.c.l.b16 %v148
  %v245 = vunpack.c.l.b16 %v149
  %v246 = vunpack.c.l.b16 %v150
  %v247 = vunpack.c.l.b16 %v151
  %v248 = vunpack.c.l.b16 %v152
  %v249 = vunpack.c.l.b16 %v153
  %v250 = vunpack.c.l.b16 %v154
  %v251 = vunpack.c.l.b16 %v155
  %v252 = vunpack.c.l.b16 %v156
  %v253 = vunpack.c.l.b16 %v157
  %v254 = vunpack.c.l.b16 %v158
  %v255 = vunpack.c.l.b16 %v159
  %v256 = vunpack.c.l.b16 %v160
  %v257 = vunpack.c.l.b16 %v161
  %v258 = vunpack.c.l.b16 %v162
  %v259 = vunpack.c.l.b16 %v163
  %v260 = vunpack.c.l.b16 %v164
  %v261 = vunpack.c.l.b16 %v165
  %v262 = vunpack.c.l.b16 %v166
  %v263 = vunpack.c.l.b16 %v167
  %v264 = vunpack.c.l.b16 %v168
  %v265 = vpack.c.b16 %v234, %v233
  %v266 = vpack.c.b16 %v236, %v235
  %v267 = vpack.c.b16 %v238, %v237
  %v268 = vpack.c.b16 %v240, %v239
  %v269 = vpack.c.b16 %v242, %v241
  %v270 = vpack.c.b16 %v244, %v243
  %v271 = vpack.c.b16 %v246, %v245
  %v272 = vpack.c.b16 %v248, %v247
  %v273 = vpack.c.b16 %v250, %v249
  %v274 = vpack.c.b16 %v252, %v251
  %v275 = vpack.c.b16 %v254, %v253
  %v276 = vpack.c.b16 %v256, %v255
  %v277 = vpack.c.b16 %v258, %v257
  %v278 = vpack.c.b16 %v260, %v259
  %v279 = vpack.c.b16 %v262, %v261
  %v280 = vpack.c.b16 %v264, %v263
  %297 = vmatprep.subr.bf16.mxu0 0
  %298 = vmatpush1.bf16.msra.mxu0 %v265
  %299 = vmatprep.subr.bf16.mxu0 0
  %300 = vmatpush1.bf16.msra.mxu0 %v266
  %301 = vmatprep.subr.bf16.mxu0 0
  %302 = vmatpush1.bf16.msra.mxu0 %v267
  %303 = vmatprep.subr.bf16.mxu0 0
  %304 = vmatpush1.bf16.msra.mxu0 %v268
  %305 = vmatprep.subr.bf16.mxu0 0
  %306 = vmatpush1.bf16.msra.mxu0 %v269
  %307 = vmatprep.subr.bf16.mxu0 0
  %308 = vmatpush1.bf16.msra.mxu0 %v270
  %309 = vmatprep.subr.bf16.mxu0 0
  %310 = vmatpush1.bf16.msra.mxu0 %v271
  %311 = vmatprep.subr.bf16.mxu0 0
  %312 = vmatpush1.bf16.msra.mxu0 %v272
  %313 = vmatprep.subr.bf16.mxu0 0
  %314 = vmatpush1.bf16.msra.mxu0 %v273
  %315 = vmatprep.subr.bf16.mxu0 0
  %316 = vmatpush1.bf16.msra.mxu0 %v274
  %317 = vmatprep.subr.bf16.mxu0 0
  %318 = vmatpush1.bf16.msra.mxu0 %v275
  %319 = vmatprep.subr.bf16.mxu0 0
  %320 = vmatpush1.bf16.msra.mxu0 %v276
  %321 = vmatprep.subr.bf16.mxu0 0
  %322 = vmatpush1.bf16.msra.mxu0 %v277
  %323 = vmatprep.subr.bf16.mxu0 0
  %324 = vmatpush1.bf16.msra.mxu0 %v278
  %325 = vmatprep.subr.bf16.mxu0 0
  %326 = vmatpush1.bf16.msra.mxu0 %v279
  %327 = vmatprep.subr.bf16.mxu0 0
  %328 = vmatpush1.bf16.msra.mxu0 %v280
  %329 = vmatprep.mubr.bf16.mxu0 %v101
  %330 = vmatmul.mubr.bf16.gmra.mrb[0].mxu0 %v100
  %v331 = vpop.f32.mrb[0].mxu0
  %v332 = vadd.f32 0.0, %v331
  %v333 = vpop.f32.mrb[0].mxu0
  %v334 = vpop.f32.mrb[0].mxu0
  %v335 = vadd.f32 0.0, %v334
  %v336 = vpop.f32.mrb[0].mxu0
  %337 = vmatprep.mubr.bf16.mxu0 %v103
  %338 = vmatmul.mubr.bf16.gmra.mrb[0].mxu0 %v102
  %v339 = vpop.f32.mrb[0].mxu0
  %v340 = vadd.f32 0.0, %v339
  %v341 = vpop.f32.mrb[0].mxu0
  %v342 = vpop.f32.mrb[0].mxu0
  %v343 = vadd.f32 0.0, %v342
  %v344 = vpop.f32.mrb[0].mxu0
  %345 = vmatprep.mubr.bf16.mxu0 %v105
  %346 = vmatmul.mubr.bf16.gmra.mrb[0].mxu0 %v104
  %v347 = vpop.f32.mrb[0].mxu0
  %v348 = vadd.f32 0.0, %v347
  %v349 = vpop.f32.mrb[0].mxu0
  %v350 = vpop.f32.mrb[0].mxu0
  %v351 = vadd.f32 0.0, %v350
  %v352 = vpop.f32.mrb[0].mxu0
  %353 = vmatprep.mubr.bf16.mxu0 %v107
  %354 = vmatmul.mubr.bf16.gmra.mrb[0].mxu0 %v106
  %v355 = vpop.f32.mrb[0].mxu0
  %v356 = vadd.f32 0.0, %v355
  %v357 = vpop.f32.mrb[0].mxu0
  %v358 = vpop.f32.mrb[0].mxu0
  %v359 = vadd.f32 0.0, %v358
  %v360 = vpop.f32.mrb[0].mxu0
  %361 = vmatprep.mubr.bf16.mxu0 %v109
  %362 = vmatmul.mubr.bf16.gmra.mrb[0].mxu0 %v108
  %v363 = vpop.f32.mrb[0].mxu0
  %v364 = vadd.f32 0.0, %v363
  %v365 = vpop.f32.mrb[0].mxu0
  %v366 = vpop.f32.mrb[0].mxu0
  %v367 = vadd.f32 0.0, %v366
  %v368 = vpop.f32.mrb[0].mxu0
  %369 = vmatprep.mubr.bf16.mxu0 %v111
  %370 = vmatmul.mubr.bf16.gmra.mrb[0].mxu0 %v110
  %v371 = vpop.f32.mrb[0].mxu0
  %v372 = vadd.f32 0.0, %v371
  %v373 = vpop.f32.mrb[0].mxu0
  %v374 = vpop.f32.mrb[0].mxu0
  %v375 = vadd.f32 0.0, %v374
  %v376 = vpop.f32.mrb[0].mxu0
  %377 = vmatprep.mubr.bf16.mxu0 %v113
  %378 = vmatmul.mubr.bf16.gmra.mrb[0].mxu0 %v112
  %v379 = vpop.f32.mrb[0].mxu0
  %v380 = vadd.f32 0.0, %v379
  %v381 = vpop.f32.mrb[0].mxu0
  %v382 = vpop.f32.mrb[0].mxu0
  %v383 = vadd.f32 0.0, %v382
  %v384 = vpop.f32.mrb[0].mxu0
  %385 = vmatprep.mubr.bf16.mxu0 %v115
  %386 = vmatmul.mubr.bf16.gmra.mrb[0].mxu0 %v114
  %v387 = vpop.f32.mrb[0].mxu0
  %v388 = vadd.f32 0.0, %v387
  %v389 = vpop.f32.mrb[0].mxu0
  %v390 = vpop.f32.mrb[0].mxu0
  %v391 = vadd.f32 0.0, %v390
  %v392 = vpop.f32.mrb[0].mxu0
  %393 = vmatprep.mubr.bf16.mxu0 %v117
  %394 = vmatmul.mubr.bf16.gmra.mrb[0].mxu0 %v116
  %v395 = vpop.f32.mrb[0].mxu0
  %v396 = vadd.f32 0.0, %v395
  %v397 = vpop.f32.mrb[0].mxu0
  %v398 = vpop.f32.mrb[0].mxu0
  %v399 = vadd.f32 0.0, %v398
  %v400 = vpop.f32.mrb[0].mxu0
  %401 = vmatprep.mubr.bf16.mxu0 %v119
  %402 = vmatmul.mubr.bf16.gmra.mrb[0].mxu0 %v118
  %v403 = vpop.f32.mrb[0].mxu0
  %v404 = vadd.f32 0.0, %v403
  %v405 = vpop.f32.mrb[0].mxu0
  %v406 = vpop.f32.mrb[0].mxu0
  %v407 = vadd.f32 0.0, %v406
  %v408 = vpop.f32.mrb[0].mxu0
  %409 = vmatprep.mubr.bf16.mxu0 %v121
  %410 = vmatmul.mubr.bf16.gmra.mrb[0].mxu0 %v120
  %v411 = vpop.f32.mrb[0].mxu0
  %v412 = vadd.f32 0.0, %v411
  %v413 = vpop.f32.mrb[0].mxu0
  %v414 = vpop.f32.mrb[0].mxu0
  %v415 = vadd.f32 0.0, %v414
  %v416 = vpop.f32.mrb[0].mxu0
  %417 = vmatprep.mubr.bf16.mxu0 %v123
  %418 = vmatmul.mubr.bf16.gmra.mrb[0].mxu0 %v122
  %v419 = vpop.f32.mrb[0].mxu0
  %v420 = vadd.f32 0.0, %v419
  %v421 = vpop.f32.mrb[0].mxu0
  %v422 = vpop.f32.mrb[0].mxu0
  %v423 = vadd.f32 0.0, %v422
  %v424 = vpop.f32.mrb[0].mxu0
  %425 = vmatprep.mubr.bf16.mxu0 %v125
  %426 = vmatmul.mubr.bf16.gmra.mrb[0].mxu0 %v124
  %v427 = vpop.f32.mrb[0].mxu0
  %v428 = vadd.f32 0.0, %v427
  %v429 = vpop.f32.mrb[0].mxu0
  %v430 = vpop.f32.mrb[0].mxu0
  %v431 = vadd.f32 0.0, %v430
  %v432 = vpop.f32.mrb[0].mxu0
  %433 = vmatprep.mubr.bf16.mxu0 %v127
  %434 = vmatmul.mubr.bf16.gmra.mrb[0].mxu0 %v126
  %v435 = vpop.f32.mrb[0].mxu0
  %v436 = vadd.f32 0.0, %v435
  %v437 = vpop.f32.mrb[0].mxu0
  %v438 = vpop.f32.mrb[0].mxu0
  %v439 = vadd.f32 0.0, %v438
  %v440 = vpop.f32.mrb[0].mxu0
  %441 = vmatprep.mubr.bf16.mxu0 %v129
  %442 = vmatmul.mubr.bf16.gmra.mrb[0].mxu0 %v128
  %v443 = vpop.f32.mrb[0].mxu0
  %v444 = vadd.f32 0.0, %v443
  %v445 = vpop.f32.mrb[0].mxu0
  %v446 = vpop.f32.mrb[0].mxu0
  %v447 = vadd.f32 0.0, %v446
  %v448 = vpop.f32.mrb[0].mxu0
  %449 = vmatprep.mubr.bf16.mxu0 %v131
  %450 = vmatmul.mubr.bf16.gmra.mrb[0].mxu0 %v130
  %v451 = vpop.f32.mrb[0].mxu0
  %v452 = vadd.f32 0.0, %v451
  %v453 = vpop.f32.mrb[0].mxu0
  %v454 = vpop.f32.mrb[0].mxu0
  %v455 = vadd.f32 0.0, %v454
  %v456 = vpop.f32.mrb[0].mxu0
  %457 = vdwg.mxu0
  %v458 = vadd.f32 %v169, %v332
  %v459 = vadd.f32 %v170, %v335
  %v460 = vadd.f32 %v171, %v340
  %v461 = vadd.f32 %v172, %v343
  %v462 = vadd.f32 %v173, %v348
  %v463 = vadd.f32 %v174, %v351
  %v464 = vadd.f32 %v175, %v356
  %v465 = vadd.f32 %v176, %v359
  %v466 = vadd.f32 %v177, %v364
  %v467 = vadd.f32 %v178, %v367
  %v468 = vadd.f32 %v179, %v372
  %v469 = vadd.f32 %v180, %v375
  %v470 = vadd.f32 %v181, %v380
  %v471 = vadd.f32 %v182, %v383
  %v472 = vadd.f32 %v183, %v388
  %v473 = vadd.f32 %v184, %v391
  %v474 = vadd.f32 %v185, %v396
  %v475 = vadd.f32 %v186, %v399
  %v476 = vadd.f32 %v187, %v404
  %v477 = vadd.f32 %v188, %v407
  %v478 = vadd.f32 %v189, %v412
  %v479 = vadd.f32 %v190, %v415
  %v480 = vadd.f32 %v191, %v420
  %v481 = vadd.f32 %v192, %v423
  %v482 = vadd.f32 %v193, %v428
  %v483 = vadd.f32 %v194, %v431
  %v484 = vadd.f32 %v195, %v436
  %v485 = vadd.f32 %v196, %v439
  %v486 = vadd.f32 %v197, %v444
  %v487 = vadd.f32 %v198, %v447
  %v488 = vadd.f32 %v199, %v452
  %v489 = vadd.f32 %v200, %v455
  %490 = vst [vmem:[%s3] sm:$0xff] %v458
  %491 = vst [vmem:[%s3 + $0x8] sm:$0xff] %v459
  %492 = vst [vmem:[%s3 + $0x10] sm:$0xff] %v460
  %493 = vst [vmem:[%s3 + $0x18] sm:$0xff] %v461
  %494 = vst [vmem:[%s3 + $0x20] sm:$0xff] %v462
  %495 = vst [vmem:[%s3 + $0x28] sm:$0xff] %v463
  %496 = vst [vmem:[%s3 + $0x30] sm:$0xff] %v464
  %497 = vst [vmem:[%s3 + $0x38] sm:$0xff] %v465
  %498 = vst [vmem:[%s3 + $0x40] sm:$0xff] %v466
  %499 = vst [vmem:[%s3 + $0x48] sm:$0xff] %v467
  %500 = vst [vmem:[%s3 + $0x50] sm:$0xff] %v468
  %501 = vst [vmem:[%s3 + $0x58] sm:$0xff] %v469
  %502 = vst [vmem:[%s3 + $0x60] sm:$0xff] %v470
  %503 = vst [vmem:[%s3 + $0x68] sm:$0xff] %v471
  %504 = vst [vmem:[%s3 + $0x70] sm:$0xff] %v472
  %505 = vst [vmem:[%s3 + $0x78] sm:$0xff] %v473
  %506 = vst [vmem:[%s3 + $0x80] sm:$0xff] %v474
  %507 = vst [vmem:[%s3 + $0x88] sm:$0xff] %v475
  %508 = vst [vmem:[%s3 + $0x90] sm:$0xff] %v476
  %509 = vst [vmem:[%s3 + $0x98] sm:$0xff] %v477
  %510 = vst [vmem:[%s3 + $0xa0] sm:$0xff] %v478
  %511 = vst [vmem:[%s3 + $0xa8] sm:$0xff] %v479
  %512 = vst [vmem:[%s3 + $0xb0] sm:$0xff] %v480
  %513 = vst [vmem:[%s3 + $0xb8] sm:$0xff] %v481
  %514 = vst [vmem:[%s3 + $0xc0] sm:$0xff] %v482
  %515 = vst [vmem:[%s3 + $0xc8] sm:$0xff] %v483
  %516 = vst [vmem:[%s3 + $0xd0] sm:$0xff] %v484
  %517 = vst [vmem:[%s3 + $0xd8] sm:$0xff] %v485
  %518 = vst [vmem:[%s3 + $0xe0] sm:$0xff] %v486
  %519 = vst [vmem:[%s3 + $0xe8] sm:$0xff] %v487
  %520 = vst [vmem:[%s3 + $0xf0] sm:$0xff] %v488
  %521 = vst [vmem:[%s3 + $0xf8] sm:$0xff] %v489
  %v522 = vld [vmem:[#allocation2] sm:$0xff]
  %v523 = vld [vmem:[#allocation2 + $0x8] sm:$0xff]
  %v524 = vld [vmem:[#allocation2 + $0x10] sm:$0xff]
  %v525 = vld [vmem:[#allocation2 + $0x18] sm:$0xff]
  %v526 = vld [vmem:[#allocation2 + $0x20] sm:$0xff]
  %v527 = vld [vmem:[#allocation2 + $0x28] sm:$0xff]
  %v528 = vld [vmem:[#allocation2 + $0x30] sm:$0xff]
  %v529 = vld [vmem:[#allocation2 + $0x38] sm:$0xff]
  %v530 = vld [vmem:[#allocation2 + $0x40] sm:$0xff]
  %v531 = vld [vmem:[#allocation2 + $0x48] sm:$0xff]
  %v532 = vld [vmem:[#allocation2 + $0x50] sm:$0xff]
  %v533 = vld [vmem:[#allocation2 + $0x58] sm:$0xff]
  %v534 = vld [vmem:[#allocation2 + $0x60] sm:$0xff]
  %v535 = vld [vmem:[#allocation2 + $0x68] sm:$0xff]
  %v536 = vld [vmem:[#allocation2 + $0x70] sm:$0xff]
  %v537 = vld [vmem:[#allocation2 + $0x78] sm:$0xff]
  %v538 = vld [vmem:[#allocation2 + $0x80] sm:$0xff]
  %v539 = vld [vmem:[#allocation2 + $0x88] sm:$0xff]
  %v540 = vld [vmem:[#allocation2 + $0x90] sm:$0xff]
  %v541 = vld [vmem:[#allocation2 + $0x98] sm:$0xff]
  %v542 = vld [vmem:[#allocation2 + $0xa0] sm:$0xff]
  %v543 = vld [vmem:[#allocation2 + $0xa8] sm:$0xff]
  %v544 = vld [vmem:[#allocation2 + $0xb0] sm:$0xff]
  %v545 = vld [vmem:[#allocation2 + $0xb8] sm:$0xff]
  %v546 = vld [vmem:[#allocation2 + $0xc0] sm:$0xff]
  %v547 = vld [vmem:[#allocation2 + $0xc8] sm:$0xff]
  %v548 = vld [vmem:[#allocation2 + $0xd0] sm:$0xff]
  %v549 = vld [vmem:[#allocation2 + $0xd8] sm:$0xff]
  %v550 = vld [vmem:[#allocation2 + $0xe0] sm:$0xff]
  %v551 = vld [vmem:[#allocation2 + $0xe8] sm:$0xff]
  %v552 = vld [vmem:[#allocation2 + $0xf0] sm:$0xff]
  %v553 = vld [vmem:[#allocation2 + $0xf8] sm:$0xff]
  %v554 = vunpack.c.l.bf16 %v100
  %v555 = vunpack.c.l.bf16 %v101
  %v556 = vunpack.c.h.bf16 %v100
  %v557 = vunpack.c.h.bf16 %v101
  %v558 = vunpack.c.l.bf16 %v102
  %v559 = vunpack.c.l.bf16 %v103
  %v560 = vunpack.c.h.bf16 %v102
  %v561 = vunpack.c.h.bf16 %v103
  %v562 = vunpack.c.l.bf16 %v104
  %v563 = vunpack.c.l.bf16 %v105
  %v564 = vunpack.c.h.bf16 %v104
  %v565 = vunpack.c.h.bf16 %v105
  %v566 = vunpack.c.l.bf16 %v106
  %v567 = vunpack.c.l.bf16 %v107
  %v568 = vunpack.c.h.bf16 %v106
  %v569 = vunpack.c.h.bf16 %v107
  %v570 = vunpack.c.l.bf16 %v108
  %v571 = vunpack.c.l.bf16 %v109
  %v572 = vunpack.c.h.bf16 %v108
  %v573 = vunpack.c.h.bf16 %v109
  %v574 = vunpack.c.l.bf16 %v110
  %v575 = vunpack.c.l.bf16 %v111
  %v576 = vunpack.c.h.bf16 %v110
  %v577 = vunpack.c.h.bf16 %v111
  %v578 = vunpack.c.l.bf16 %v112
  %v579 = vunpack.c.l.bf16 %v113
  %v580 = vunpack.c.h.bf16 %v112
  %v581 = vunpack.c.h.bf16 %v113
  %v582 = vunpack.c.l.bf16 %v114
  %v583 = vunpack.c.l.bf16 %v115
  %v584 = vunpack.c.h.bf16 %v114
  %v585 = vunpack.c.h.bf16 %v115
  %v586 = vunpack.c.l.bf16 %v116
  %v587 = vunpack.c.l.bf16 %v117
  %v588 = vunpack.c.h.bf16 %v116
  %v589 = vunpack.c.h.bf16 %v117
  %v590 = vunpack.c.l.bf16 %v118
  %v591 = vunpack.c.l.bf16 %v119
  %v592 = vunpack.c.h.bf16 %v118
  %v593 = vunpack.c.h.bf16 %v119
  %v594 = vunpack.c.l.bf16 %v120
  %v595 = vunpack.c.l.bf16 %v121
  %v596 = vunpack.c.h.bf16 %v120
  %v597 = vunpack.c.h.bf16 %v121
  %v598 = vunpack.c.l.bf16 %v122
  %v599 = vunpack.c.l.bf16 %v123
  %v600 = vunpack.c.h.bf16 %v122
  %v601 = vunpack.c.h.bf16 %v123
  %v602 = vunpack.c.l.bf16 %v124
  %v603 = vunpack.c.l.bf16 %v125
  %v604 = vunpack.c.h.bf16 %v124
  %v605 = vunpack.c.h.bf16 %v125
  %v606 = vunpack.c.l.bf16 %v126
  %v607 = vunpack.c.l.bf16 %v127
  %v608 = vunpack.c.h.bf16 %v126
  %v609 = vunpack.c.h.bf16 %v127
  %v610 = vunpack.c.l.bf16 %v128
  %v611 = vunpack.c.l.bf16 %v129
  %v612 = vunpack.c.h.bf16 %v128
  %v613 = vunpack.c.h.bf16 %v129
  %v614 = vunpack.c.l.bf16 %v130
  %v615 = vunpack.c.l.bf16 %v131
  %v616 = vunpack.c.h.bf16 %v130
  %v617 = vunpack.c.h.bf16 %v131
  %v618 = vadd.f32 %v554, %v555
  %619 = vadd.xlane.f32.xlu0 %v618
  %v620 = vpop.xlane.xlu0 %619
  %v621 = vadd.f32 %v556, %v557
  %622 = vadd.xlane.f32.xlu0 %v621
  %v623 = vpop.xlane.xlu0 %622
  %v624 = vadd.f32 %v558, %v559
  %625 = vadd.xlane.f32.xlu0 %v624
  %v626 = vpop.xlane.xlu0 %625
  %v627 = vadd.f32 %v560, %v561
  %628 = vadd.xlane.f32.xlu0 %v627
  %v629 = vpop.xlane.xlu0 %628
  %v630 = vadd.f32 %v562, %v563
  %631 = vadd.xlane.f32.xlu0 %v630
  %v632 = vpop.xlane.xlu0 %631
  %v633 = vadd.f32 %v564, %v565
  %634 = vadd.xlane.f32.xlu0 %v633
  %v635 = vpop.xlane.xlu0 %634
  %v636 = vadd.f32 %v566, %v567
  %637 = vadd.xlane.f32.xlu0 %v636
  %v638 = vpop.xlane.xlu0 %637
  %v639 = vadd.f32 %v568, %v569
  %640 = vadd.xlane.f32.xlu0 %v639
  %v641 = vpop.xlane.xlu0 %640
  %v642 = vadd.f32 %v570, %v571
  %643 = vadd.xlane.f32.xlu0 %v642
  %v644 = vpop.xlane.xlu0 %643
  %v645 = vadd.f32 %v572, %v573
  %646 = vadd.xlane.f32.xlu0 %v645
  %v647 = vpop.xlane.xlu0 %646
  %v648 = vadd.f32 %v574, %v575
  %649 = vadd.xlane.f32.xlu0 %v648
  %v650 = vpop.xlane.xlu0 %649
  %v651 = vadd.f32 %v576, %v577
  %652 = vadd.xlane.f32.xlu0 %v651
  %v653 = vpop.xlane.xlu0 %652
  %v654 = vadd.f32 %v578, %v579
  %655 = vadd.xlane.f32.xlu0 %v654
  %v656 = vpop.xlane.xlu0 %655
  %v657 = vadd.f32 %v580, %v581
  %658 = vadd.xlane.f32.xlu0 %v657
  %v659 = vpop.xlane.xlu0 %658
  %v660 = vadd.f32 %v582, %v583
  %661 = vadd.xlane.f32.xlu0 %v660
  %v662 = vpop.xlane.xlu0 %661
  %v663 = vadd.f32 %v584, %v585
  %664 = vadd.xlane.f32.xlu0 %v663
  %v665 = vpop.xlane.xlu0 %664
  %v666 = vadd.f32 %v586, %v587
  %667 = vadd.xlane.f32.xlu0 %v666
  %v668 = vpop.xlane.xlu0 %667
  %v669 = vadd.f32 %v588, %v589
  %670 = vadd.xlane.f32.xlu0 %v669
  %v671 = vpop.xlane.xlu0 %670
  %v672 = vadd.f32 %v590, %v591
  %673 = vadd.xlane.f32.xlu0 %v672
  %v674 = vpop.xlane.xlu0 %673
  %v675 = vadd.f32 %v592, %v593
  %676 = vadd.xlane.f32.xlu0 %v675
  %v677 = vpop.xlane.xlu0 %676
  %v678 = vadd.f32 %v594, %v595
  %679 = vadd.xlane.f32.xlu0 %v678
  %v680 = vpop.xlane.xlu0 %679
  %v681 = vadd.f32 %v596, %v597
  %682 = vadd.xlane.f32.xlu0 %v681
  %v683 = vpop.xlane.xlu0 %682
  %v684 = vadd.f32 %v598, %v599
  %685 = vadd.xlane.f32.xlu0 %v684
  %v686 = vpop.xlane.xlu0 %685
  %v687 = vadd.f32 %v600, %v601
  %688 = vadd.xlane.f32.xlu0 %v687
  %v689 = vpop.xlane.xlu0 %688
  %v690 = vadd.f32 %v602, %v603
  %691 = vadd.xlane.f32.xlu0 %v690
  %v692 = vpop.xlane.xlu0 %691
  %v693 = vadd.f32 %v604, %v605
  %694 = vadd.xlane.f32.xlu0 %v693
  %v695 = vpop.xlane.xlu0 %694
  %v696 = vadd.f32 %v606, %v607
  %697 = vadd.xlane.f32.xlu0 %v696
  %v698 = vpop.xlane.xlu0 %697
  %v699 = vadd.f32 %v608, %v609
  %700 = vadd.xlane.f32.xlu0 %v699
  %v701 = vpop.xlane.xlu0 %700
  %v702 = vadd.f32 %v610, %v611
  %703 = vadd.xlane.f32.xlu0 %v702
  %v704 = vpop.xlane.xlu0 %703
  %v705 = vadd.f32 %v612, %v613
  %706 = vadd.xlane.f32.xlu0 %v705
  %v707 = vpop.xlane.xlu0 %706
  %v708 = vadd.f32 %v614, %v615
  %709 = vadd.xlane.f32.xlu0 %v708
  %v710 = vpop.xlane.xlu0 %709
  %v711 = vadd.f32 %v616, %v617
  %712 = vadd.xlane.f32.xlu0 %v711
  %v713 = vpop.xlane.xlu0 %712
  %v714 = vadd.f32 %v522, %v620
  %v715 = vadd.f32 %v523, %v623
  %v716 = vadd.f32 %v524, %v626
  %v717 = vadd.f32 %v525, %v629
  %v718 = vadd.f32 %v526, %v632
  %v719 = vadd.f32 %v527, %v635
  %v720 = vadd.f32 %v528, %v638
  %v721 = vadd.f32 %v529, %v641
  %v722 = vadd.f32 %v530, %v644
  %v723 = vadd.f32 %v531, %v647
  %v724 = vadd.f32 %v532, %v650
  %v725 = vadd.f32 %v533, %v653
  %v726 = vadd.f32 %v534, %v656
  %v727 = vadd.f32 %v535, %v659
  %v728 = vadd.f32 %v536, %v662
  %v729 = vadd.f32 %v537, %v665
  %v730 = vadd.f32 %v538, %v668
  %v731 = vadd.f32 %v539, %v671
  %v732 = vadd.f32 %v540, %v674
  %v733 = vadd.f32 %v541, %v677
  %v734 = vadd.f32 %v542, %v680
  %v735 = vadd.f32 %v543, %v683
  %v736 = vadd.f32 %v544, %v686
  %v737 = vadd.f32 %v545, %v689
  %v738 = vadd.f32 %v546, %v692
  %v739 = vadd.f32 %v547, %v695
  %v740 = vadd.f32 %v548, %v698
  %v741 = vadd.f32 %v549, %v701
  %v742 = vadd.f32 %v550, %v704
  %v743 = vadd.f32 %v551, %v707
  %v744 = vadd.f32 %v552, %v710
  %v745 = vadd.f32 %v553, %v713
  %vm746 = vcmask 7168
  %747 = vst.msk [vmem:[#allocation2] sm:$0xff] %vm746, %v714
  %748 = vst.msk [vmem:[#allocation2 + $0x8] sm:$0xff] %vm746, %v715
  %749 = vst.msk [vmem:[#allocation2 + $0x10] sm:$0xff] %vm746, %v716
  %750 = vst.msk [vmem:[#allocation2 + $0x18] sm:$0xff] %vm746, %v717
  %751 = vst.msk [vmem:[#allocation2 + $0x20] sm:$0xff] %vm746, %v718
  %752 = vst.msk [vmem:[#allocation2 + $0x28] sm:$0xff] %vm746, %v719
  %753 = vst.msk [vmem:[#allocation2 + $0x30] sm:$0xff] %vm746, %v720
  %754 = vst.msk [vmem:[#allocation2 + $0x38] sm:$0xff] %vm746, %v721
  %755 = vst.msk [vmem:[#allocation2 + $0x40] sm:$0xff] %vm746, %v722
  %756 = vst.msk [vmem:[#allocation2 + $0x48] sm:$0xff] %vm746, %v723
  %757 = vst.msk [vmem:[#allocation2 + $0x50] sm:$0xff] %vm746, %v724
  %758 = vst.msk [vmem:[#allocation2 + $0x58] sm:$0xff] %vm746, %v725
  %759 = vst.msk [vmem:[#allocation2 + $0x60] sm:$0xff] %vm746, %v726
  %760 = vst.msk [vmem:[#allocation2 + $0x68] sm:$0xff] %vm746, %v727
  %761 = vst.msk [vmem:[#allocation2 + $0x70] sm:$0xff] %vm746, %v728
  %762 = vst.msk [vmem:[#allocation2 + $0x78] sm:$0xff] %vm746, %v729
  %763 = vst.msk [vmem:[#allocation2 + $0x80] sm:$0xff] %vm746, %v730
  %764 = vst.msk [vmem:[#allocation2 + $0x88] sm:$0xff] %vm746, %v731
  %765 = vst.msk [vmem:[#allocation2 + $0x90] sm:$0xff] %vm746, %v732
  %766 = vst.msk [vmem:[#allocation2 + $0x98] sm:$0xff] %vm746, %v733
  %767 = vst.msk [vmem:[#allocation2 + $0xa0] sm:$0xff] %vm746, %v734
  %768 = vst.msk [vmem:[#allocation2 + $0xa8] sm:$0xff] %vm746, %v735
  %769 = vst.msk [vmem:[#allocation2 + $0xb0] sm:$0xff] %vm746, %v736
  %770 = vst.msk [vmem:[#allocation2 + $0xb8] sm:$0xff] %vm746, %v737
  %771 = vst.msk [vmem:[#allocation2 + $0xc0] sm:$0xff] %vm746, %v738
  %772 = vst.msk [vmem:[#allocation2 + $0xc8] sm:$0xff] %vm746, %v739
  %773 = vst.msk [vmem:[#allocation2 + $0xd0] sm:$0xff] %vm746, %v740
  %774 = vst.msk [vmem:[#allocation2 + $0xd8] sm:$0xff] %vm746, %v741
  %775 = vst.msk [vmem:[#allocation2 + $0xe0] sm:$0xff] %vm746, %v742
  %776 = vst.msk [vmem:[#allocation2 + $0xe8] sm:$0xff] %vm746, %v743
  %777 = vst.msk [vmem:[#allocation2 + $0xf0] sm:$0xff] %vm746, %v744
  %778 = vst.msk [vmem:[#allocation2 + $0xf8] sm:$0xff] %vm746, %v745
  // Predicated region
  $region18: #{gcn_layer.3} parent=0 // pred_check
    %p779 = pneg %p15
  $region19: #{gcn_layer.3} parent=0 // pred_check_branch
    %781 = sbr.rel (%p779) target = $region21
  $region20: #{gcn_layer.3} parent=0 // pred_region
    %v782 = vld [vmem:[#allocation2] sm:$0xff]
    %v783 = vld [vmem:[#allocation2 + $0x8] sm:$0xff]
    %v784 = vld [vmem:[#allocation2 + $0x10] sm:$0xff]
    %v785 = vld [vmem:[#allocation2 + $0x18] sm:$0xff]
    %v786 = vld [vmem:[#allocation2 + $0x20] sm:$0xff]
    %v787 = vld [vmem:[#allocation2 + $0x28] sm:$0xff]
    %v788 = vld [vmem:[#allocation2 + $0x30] sm:$0xff]
    %v789 = vld [vmem:[#allocation2 + $0x38] sm:$0xff]
    %v790 = vld [vmem:[#allocation2 + $0x40] sm:$0xff]
    %v791 = vld [vmem:[#allocation2 + $0x48] sm:$0xff]
    %v792 = vld [vmem:[#allocation2 + $0x50] sm:$0xff]
    %v793 = vld [vmem:[#allocation2 + $0x58] sm:$0xff]
    %v794 = vld [vmem:[#allocation2 + $0x60] sm:$0xff]
    %v795 = vld [vmem:[#allocation2 + $0x68] sm:$0xff]
    %v796 = vld [vmem:[#allocation2 + $0x70] sm:$0xff]
    %v797 = vld [vmem:[#allocation2 + $0x78] sm:$0xff]
    %v798 = vld [vmem:[#allocation2 + $0x80] sm:$0xff]
    %v799 = vld [vmem:[#allocation2 + $0x88] sm:$0xff]
    %v800 = vld [vmem:[#allocation2 + $0x90] sm:$0xff]
    %v801 = vld [vmem:[#allocation2 + $0x98] sm:$0xff]
    %v802 = vld [vmem:[#allocation2 + $0xa0] sm:$0xff]
    %v803 = vld [vmem:[#allocation2 + $0xa8] sm:$0xff]
    %v804 = vld [vmem:[#allocation2 + $0xb0] sm:$0xff]
    %v805 = vld [vmem:[#allocation2 + $0xb8] sm:$0xff]
    %v806 = vld [vmem:[#allocation2 + $0xc0] sm:$0xff]
    %v807 = vld [vmem:[#allocation2 + $0xc8] sm:$0xff]
    %v808 = vld [vmem:[#allocation2 + $0xd0] sm:$0xff]
    %v809 = vld [vmem:[#allocation2 + $0xd8] sm:$0xff]
    %v810 = vld [vmem:[#allocation2 + $0xe0] sm:$0xff]
    %v811 = vld [vmem:[#allocation2 + $0xe8] sm:$0xff]
    %v812 = vld [vmem:[#allocation2 + $0xf0] sm:$0xff]
    %v813 = vld [vmem:[#allocation2 + $0xf8] sm:$0xff]
    %v814 = vmax.f32 %v782, 1.0
    %v815 = vmax.f32 %v783, 1.0
    %v816 = vmax.f32 %v784, 1.0
    %v817 = vmax.f32 %v785, 1.0
    %v818 = vmax.f32 %v786, 1.0
    %v819 = vmax.f32 %v787, 1.0
    %v820 = vmax.f32 %v788, 1.0
    %v821 = vmax.f32 %v789, 1.0
    %v822 = vmax.f32 %v790, 1.0
    %v823 = vmax.f32 %v791, 1.0
    %v824 = vmax.f32 %v792, 1.0
    %v825 = vmax.f32 %v793, 1.0
    %v826 = vmax.f32 %v794, 1.0
    %v827 = vmax.f32 %v795, 1.0
    %v828 = vmax.f32 %v796, 1.0
    %v829 = vmax.f32 %v797, 1.0
    %v830 = vmax.f32 %v798, 1.0
    %v831 = vmax.f32 %v799, 1.0
    %v832 = vmax.f32 %v800, 1.0
    %v833 = vmax.f32 %v801, 1.0
    %v834 = vmax.f32 %v802, 1.0
    %v835 = vmax.f32 %v803, 1.0
    %v836 = vmax.f32 %v804, 1.0
    %v837 = vmax.f32 %v805, 1.0
    %v838 = vmax.f32 %v806, 1.0
    %v839 = vmax.f32 %v807, 1.0
    %v840 = vmax.f32 %v808, 1.0
    %v841 = vmax.f32 %v809, 1.0
    %v842 = vmax.f32 %v810, 1.0
    %v843 = vmax.f32 %v811, 1.0
    %v844 = vmax.f32 %v812, 1.0
    %v845 = vmax.f32 %v813, 1.0
    %v846 = vrcp.pop %v814
    %v847 = vrcp.pop %v815
    %v848 = vrcp.pop %v816
    %v849 = vrcp.pop %v817
    %v850 = vrcp.pop %v818
    %v851 = vrcp.pop %v819
    %v852 = vrcp.pop %v820
    %v853 = vrcp.pop %v821
    %v854 = vrcp.pop %v822
    %v855 = vrcp.pop %v823
    %v856 = vrcp.pop %v824
    %v857 = vrcp.pop %v825
    %v858 = vrcp.pop %v826
    %v859 = vrcp.pop %v827
    %v860 = vrcp.pop %v828
    %v861 = vrcp.pop %v829
    %v862 = vrcp.pop %v830
    %v863 = vrcp.pop %v831
    %v864 = vrcp.pop %v832
    %v865 = vrcp.pop %v833
    %v866 = vrcp.pop %v834
    %v867 = vrcp.pop %v835
    %v868 = vrcp.pop %v836
    %v869 = vrcp.pop %v837
    %v870 = vrcp.pop %v838
    %v871 = vrcp.pop %v839
    %v872 = vrcp.pop %v840
    %v873 = vrcp.pop %v841
    %v874 = vrcp.pop %v842
    %v875 = vrcp.pop %v843
    %v876 = vrcp.pop %v844
    %v877 = vrcp.pop %v845
    %v878 = vld [vmem:[%s3] sm:$0xff]
    %v879 = vld [vmem:[%s3 + $0x8] sm:$0xff]
    %v880 = vld [vmem:[%s3 + $0x10] sm:$0xff]
    %v881 = vld [vmem:[%s3 + $0x18] sm:$0xff]
    %v882 = vld [vmem:[%s3 + $0x20] sm:$0xff]
    %v883 = vld [vmem:[%s3 + $0x28] sm:$0xff]
    %v884 = vld [vmem:[%s3 + $0x30] sm:$0xff]
    %v885 = vld [vmem:[%s3 + $0x38] sm:$0xff]
    %v886 = vld [vmem:[%s3 + $0x40] sm:$0xff]
    %v887 = vld [vmem:[%s3 + $0x48] sm:$0xff]
    %v888 = vld [vmem:[%s3 + $0x50] sm:$0xff]
    %v889 = vld [vmem:[%s3 + $0x58] sm:$0xff]
    %v890 = vld [vmem:[%s3 + $0x60] sm:$0xff]
    %v891 = vld [vmem:[%s3 + $0x68] sm:$0xff]
    %v892 = vld [vmem:[%s3 + $0x70] sm:$0xff]
    %v893 = vld [vmem:[%s3 + $0x78] sm:$0xff]
    %v894 = vld [vmem:[%s3 + $0x80] sm:$0xff]
    %v895 = vld [vmem:[%s3 + $0x88] sm:$0xff]
    %v896 = vld [vmem:[%s3 + $0x90] sm:$0xff]
    %v897 = vld [vmem:[%s3 + $0x98] sm:$0xff]
    %v898 = vld [vmem:[%s3 + $0xa0] sm:$0xff]
    %v899 = vld [vmem:[%s3 + $0xa8] sm:$0xff]
    %v900 = vld [vmem:[%s3 + $0xb0] sm:$0xff]
    %v901 = vld [vmem:[%s3 + $0xb8] sm:$0xff]
    %v902 = vld [vmem:[%s3 + $0xc0] sm:$0xff]
    %v903 = vld [vmem:[%s3 + $0xc8] sm:$0xff]
    %v904 = vld [vmem:[%s3 + $0xd0] sm:$0xff]
    %v905 = vld [vmem:[%s3 + $0xd8] sm:$0xff]
    %v906 = vld [vmem:[%s3 + $0xe0] sm:$0xff]
    %v907 = vld [vmem:[%s3 + $0xe8] sm:$0xff]
    %v908 = vld [vmem:[%s3 + $0xf0] sm:$0xff]
    %v909 = vld [vmem:[%s3 + $0xf8] sm:$0xff]
    %911 = vset.pattern.permute.xlu0 0
    %912 = vperm.xlu0 %911, %v846
    %v913 = vpop.permute.xlu0 %912
    %916 = vset.pattern.permute.xlu0 0
    %917 = vperm.xlu0 %916, %v847
    %v918 = vpop.permute.xlu0 %917
    %921 = vset.pattern.permute.xlu0 0
    %922 = vperm.xlu0 %921, %v848
    %v923 = vpop.permute.xlu0 %922
    %926 = vset.pattern.permute.xlu0 0
    %927 = vperm.xlu0 %926, %v849
    %v928 = vpop.permute.xlu0 %927
    %931 = vset.pattern.permute.xlu0 0
    %932 = vperm.xlu0 %931, %v850
    %v933 = vpop.permute.xlu0 %932
    %936 = vset.pattern.permute.xlu0 0
    %937 = vperm.xlu0 %936, %v851
    %v938 = vpop.permute.xlu0 %937
    %941 = vset.pattern.permute.xlu0 0
    %942 = vperm.xlu0 %941, %v852
    %v943 = vpop.permute.xlu0 %942
    %946 = vset.pattern.permute.xlu0 0
    %947 = vperm.xlu0 %946, %v853
    %v948 = vpop.permute.xlu0 %947
    %951 = vset.pattern.permute.xlu0 0
    %952 = vperm.xlu0 %951, %v854
    %v953 = vpop.permute.xlu0 %952
    %956 = vset.pattern.permute.xlu0 0
    %957 = vperm.xlu0 %956, %v855
    %v958 = vpop.permute.xlu0 %957
    %961 = vset.pattern.permute.xlu0 0
    %962 = vperm.xlu0 %961, %v856
    %v963 = vpop.permute.xlu0 %962
    %966 = vset.pattern.permute.xlu0 0
    %967 = vperm.xlu0 %966, %v857
    %v968 = vpop.permute.xlu0 %967
    %971 = vset.pattern.permute.xlu0 0
    %972 = vperm.xlu0 %971, %v858
    %v973 = vpop.permute.xlu0 %972
    %976 = vset.pattern.permute.xlu0 0
    %977 = vperm.xlu0 %976, %v859
    %v978 = vpop.permute.xlu0 %977
    %981 = vset.pattern.permute.xlu0 0
    %982 = vperm.xlu0 %981, %v860
    %v983 = vpop.permute.xlu0 %982
    %986 = vset.pattern.permute.xlu0 0
    %987 = vperm.xlu0 %986, %v861
    %v988 = vpop.permute.xlu0 %987
    %991 = vset.pattern.permute.xlu0 0
    %992 = vperm.xlu0 %991, %v862
    %v993 = vpop.permute.xlu0 %992
    %996 = vset.pattern.permute.xlu0 0
    %997 = vperm.xlu0 %996, %v863
    %v998 = vpop.permute.xlu0 %997
    %1001 = vset.pattern.permute.xlu0 0
    %1002 = vperm.xlu0 %1001, %v864
    %v1003 = vpop.permute.xlu0 %1002
    %1006 = vset.pattern.permute.xlu0 0
    %1007 = vperm.xlu0 %1006, %v865
    %v1008 = vpop.permute.xlu0 %1007
    %1011 = vset.pattern.permute.xlu0 0
    %1012 = vperm.xlu0 %1011, %v866
    %v1013 = vpop.permute.xlu0 %1012
    %1016 = vset.pattern.permute.xlu0 0
    %1017 = vperm.xlu0 %1016, %v867
    %v1018 = vpop.permute.xlu0 %1017
    %1021 = vset.pattern.permute.xlu0 0
    %1022 = vperm.xlu0 %1021, %v868
    %v1023 = vpop.permute.xlu0 %1022
    %1026 = vset.pattern.permute.xlu0 0
    %1027 = vperm.xlu0 %1026, %v869
    %v1028 = vpop.permute.xlu0 %1027
    %1031 = vset.pattern.permute.xlu0 0
    %1032 = vperm.xlu0 %1031, %v870
    %v1033 = vpop.permute.xlu0 %1032
    %1036 = vset.pattern.permute.xlu0 0
    %1037 = vperm.xlu0 %1036, %v871
    %v1038 = vpop.permute.xlu0 %1037
    %1041 = vset.pattern.permute.xlu0 0
    %1042 = vperm.xlu0 %1041, %v872
    %v1043 = vpop.permute.xlu0 %1042
    %1046 = vset.pattern.permute.xlu0 0
    %1047 = vperm.xlu0 %1046, %v873
    %v1048 = vpop.permute.xlu0 %1047
    %1051 = vset.pattern.permute.xlu0 0
    %1052 = vperm.xlu0 %1051, %v874
    %v1053 = vpop.permute.xlu0 %1052
    %1056 = vset.pattern.permute.xlu0 0
    %1057 = vperm.xlu0 %1056, %v875
    %v1058 = vpop.permute.xlu0 %1057
    %1061 = vset.pattern.permute.xlu0 0
    %1062 = vperm.xlu0 %1061, %v876
    %v1063 = vpop.permute.xlu0 %1062
    %1066 = vset.pattern.permute.xlu0 0
    %1067 = vperm.xlu0 %1066, %v877
    %v1068 = vpop.permute.xlu0 %1067
    %v1070 = vmul.f32 %v878, %v913
    %v1071 = vmul.f32 %v879, %v918
    %v1072 = vmul.f32 %v880, %v923
    %v1073 = vmul.f32 %v881, %v928
    %v1074 = vmul.f32 %v882, %v933
    %v1075 = vmul.f32 %v883, %v938
    %v1076 = vmul.f32 %v884, %v943
    %v1077 = vmul.f32 %v885, %v948
    %v1078 = vmul.f32 %v886, %v953
    %v1079 = vmul.f32 %v887, %v958
    %v1080 = vmul.f32 %v888, %v963
    %v1081 = vmul.f32 %v889, %v968
    %v1082 = vmul.f32 %v890, %v973
    %v1083 = vmul.f32 %v891, %v978
    %v1084 = vmul.f32 %v892, %v983
    %v1085 = vmul.f32 %v893, %v988
    %v1086 = vmul.f32 %v894, %v993
    %v1087 = vmul.f32 %v895, %v998
    %v1088 = vmul.f32 %v896, %v1003
    %v1089 = vmul.f32 %v897, %v1008
    %v1090 = vmul.f32 %v898, %v1013
    %v1091 = vmul.f32 %v899, %v1018
    %v1092 = vmul.f32 %v900, %v1023
    %v1093 = vmul.f32 %v901, %v1028
    %v1094 = vmul.f32 %v902, %v1033
    %v1095 = vmul.f32 %v903, %v1038
    %v1096 = vmul.f32 %v904, %v1043
    %v1097 = vmul.f32 %v905, %v1048
    %v1098 = vmul.f32 %v906, %v1053
    %v1099 = vmul.f32 %v907, %v1058
    %v1100 = vmul.f32 %v908, %v1063
    %v1101 = vmul.f32 %v909, %v1068
    %v1102 = vld [vmem:[%s2] sm:$0x1]
    %v1104 = vlaneseq
    %v1105 = vshrl.u32 %v1104, 7
    %v1106 = vsub.s32 0, %v1105
    %v1107 = vrot.slane %v1102, %v1106
    %v1109 = vadd.f32 %v1070, %v1107
    %v1110 = vadd.f32 %v1071, %v1107
    %v1111 = vadd.f32 %v1072, %v1107
    %v1112 = vadd.f32 %v1073, %v1107
    %v1113 = vadd.f32 %v1074, %v1107
    %v1114 = vadd.f32 %v1075, %v1107
    %v1115 = vadd.f32 %v1076, %v1107
    %v1116 = vadd.f32 %v1077, %v1107
    %v1117 = vadd.f32 %v1078, %v1107
    %v1118 = vadd.f32 %v1079, %v1107
    %v1119 = vadd.f32 %v1080, %v1107
    %v1120 = vadd.f32 %v1081, %v1107
    %v1121 = vadd.f32 %v1082, %v1107
    %v1122 = vadd.f32 %v1083, %v1107
    %v1123 = vadd.f32 %v1084, %v1107
    %v1124 = vadd.f32 %v1085, %v1107
    %v1125 = vadd.f32 %v1086, %v1107
    %v1126 = vadd.f32 %v1087, %v1107
    %v1127 = vadd.f32 %v1088, %v1107
    %v1128 = vadd.f32 %v1089, %v1107
    %v1129 = vadd.f32 %v1090, %v1107
    %v1130 = vadd.f32 %v1091, %v1107
    %v1131 = vadd.f32 %v1092, %v1107
    %v1132 = vadd.f32 %v1093, %v1107
    %v1133 = vadd.f32 %v1094, %v1107
    %v1134 = vadd.f32 %v1095, %v1107
    %v1135 = vadd.f32 %v1096, %v1107
    %v1136 = vadd.f32 %v1097, %v1107
    %v1137 = vadd.f32 %v1098, %v1107
    %v1138 = vadd.f32 %v1099, %v1107
    %v1139 = vadd.f32 %v1100, %v1107
    %v1140 = vadd.f32 %v1101, %v1107
    %v1141 = vmax.f32 %v1109, 0.0
    %v1142 = vmax.f32 %v1110, 0.0
    %v1143 = vmax.f32 %v1111, 0.0
    %v1144 = vmax.f32 %v1112, 0.0
    %v1145 = vmax.f32 %v1113, 0.0
    %v1146 = vmax.f32 %v1114, 0.0
    %v1147 = vmax.f32 %v1115, 0.0
    %v1148 = vmax.f32 %v1116, 0.0
    %v1149 = vmax.f32 %v1117, 0.0
    %v1150 = vmax.f32 %v1118, 0.0
    %v1151 = vmax.f32 %v1119, 0.0
    %v1152 = vmax.f32 %v1120, 0.0
    %v1153 = vmax.f32 %v1121, 0.0
    %v1154 = vmax.f32 %v1122, 0.0
    %v1155 = vmax.f32 %v1123, 0.0
    %v1156 = vmax.f32 %v1124, 0.0
    %v1157 = vmax.f32 %v1125, 0.0
    %v1158 = vmax.f32 %v1126, 0.0
    %v1159 = vmax.f32 %v1127, 0.0
    %v1160 = vmax.f32 %v1128, 0.0
    %v1161 = vmax.f32 %v1129, 0.0
    %v1162 = vmax.f32 %v1130, 0.0
    %v1163 = vmax.f32 %v1131, 0.0
    %v1164 = vmax.f32 %v1132, 0.0
    %v1165 = vmax.f32 %v1133, 0.0
    %v1166 = vmax.f32 %v1134, 0.0
    %v1167 = vmax.f32 %v1135, 0.0
    %v1168 = vmax.f32 %v1136, 0.0
    %v1169 = vmax.f32 %v1137, 0.0
    %v1170 = vmax.f32 %v1138, 0.0
    %v1171 = vmax.f32 %v1139, 0.0
    %v1172 = vmax.f32 %v1140, 0.0
    %1173 = vst [vmem:[%s3] sm:$0xff] %v1141
    %1174 = vst [vmem:[%s3 + $0x8] sm:$0xff] %v1142
    %1175 = vst [vmem:[%s3 + $0x10] sm:$0xff] %v1143
    %1176 = vst [vmem:[%s3 + $0x18] sm:$0xff] %v1144
    %1177 = vst [vmem:[%s3 + $0x20] sm:$0xff] %v1145
    %1178 = vst [vmem:[%s3 + $0x28] sm:$0xff] %v1146
    %1179 = vst [vmem:[%s3 + $0x30] sm:$0xff] %v1147
    %1180 = vst [vmem:[%s3 + $0x38] sm:$0xff] %v1148
    %1181 = vst [vmem:[%s3 + $0x40] sm:$0xff] %v1149
    %1182 = vst [vmem:[%s3 + $0x48] sm:$0xff] %v1150
    %1183 = vst [vmem:[%s3 + $0x50] sm:$0xff] %v1151
    %1184 = vst [vmem:[%s3 + $0x58] sm:$0xff] %v1152
    %1185 = vst [vmem:[%s3 + $0x60] sm:$0xff] %v1153
    %1186 = vst [vmem:[%s3 + $0x68] sm:$0xff] %v1154
    %1187 = vst [vmem:[%s3 + $0x70] sm:$0xff] %v1155
    %1188 = vst [vmem:[%s3 + $0x78] sm:$0xff] %v1156
    %1189 = vst [vmem:[%s3 + $0x80] sm:$0xff] %v1157
    %1190 = vst [vmem:[%s3 + $0x88] sm:$0xff] %v1158
    %1191 = vst [vmem:[%s3 + $0x90] sm:$0xff] %v1159
    %1192 = vst [vmem:[%s3 + $0x98] sm:$0xff] %v1160
    %1193 = vst [vmem:[%s3 + $0xa0] sm:$0xff] %v1161
    %1194 = vst [vmem:[%s3 + $0xa8] sm:$0xff] %v1162
    %1195 = vst [vmem:[%s3 + $0xb0] sm:$0xff] %v1163
    %1196 = vst [vmem:[%s3 + $0xb8] sm:$0xff] %v1164
    %1197 = vst [vmem:[%s3 + $0xc0] sm:$0xff] %v1165
    %1198 = vst [vmem:[%s3 + $0xc8] sm:$0xff] %v1166
    %1199 = vst [vmem:[%s3 + $0xd0] sm:$0xff] %v1167
    %1200 = vst [vmem:[%s3 + $0xd8] sm:$0xff] %v1168
    %1201 = vst [vmem:[%s3 + $0xe0] sm:$0xff] %v1169
    %1202 = vst [vmem:[%s3 + $0xe8] sm:$0xff] %v1170
    %1203 = vst [vmem:[%s3 + $0xf0] sm:$0xff] %v1171
    %1204 = vst [vmem:[%s3 + $0xf8] sm:$0xff] %v1172
  $region21: #{gcn_layer.3} parent=0 // pred_fallthru
    _
  // Predicated region
  $region22: #{gcn_layer.3} parent=0 // pred_check
    _
  $region23: #{gcn_layer.3} parent=0 // pred_check_branch
    %1206 = sbr.rel (0) target = $region25
  $region24: #{gcn_layer.3} parent=0 // pred_region
    _
  $region25: #{gcn_layer.3} parent=0 // pred_fallthru
    _
  // Predicated region
  $region26: #{gcn_layer.3} parent=0 // pred_check
    _
  $region27: #{gcn_layer.3} parent=0 // pred_check_branch
    %1208 = sbr.rel (0) target = $region29
  $region28: #{gcn_layer.3} parent=0 // pred_region
    _
  $region29: #{gcn_layer.3} parent=0 // pred_fallthru
    _

</llo_original>
